<compile_context>
chip_gen: v5e
topology: v5e:2x2
jax: 0.10.0
libtpu: 0.0.40
codegen_flags: <defaults>
</compile_context>

<pallas_src>
import functools

import jax
import jax.numpy as jnp
from jax.experimental import pallas as pl
from jax.experimental.pallas import tpu as pltpu


def _round_up(x, m):
    return -(-x // m) * m


_VMEM_CAP = None


def _vmem_capacity_bytes():
    """Per-core VMEM capacity (generation aware), with conservative fallbacks."""
    global _VMEM_CAP
    if _VMEM_CAP is not None:
        return _VMEM_CAP
    cap = None
    try:
        info = pltpu.get_tpu_info()
        for name in ("vmem_capacity_bytes", "vmem_bytes", "vmem_size_bytes"):
            v = getattr(info, name, None)
            if v is None:
                continue
            v = int(v)
            if v > (1 << 20):
                cap = v
                break
    except Exception:
        cap = None
    if cap is None:
        try:
            kind = jax.devices()[0].device_kind.lower()
        except Exception:
            kind = ""
        if ("v2" in kind) or ("v3" in kind):
            cap = 16 << 20
        elif any(t in kind for t in ("v4", "v5", "v6")):
            cap = 128 << 20
        else:                                   # v7x / unknown: 64 MiB per core
            cap = 64 << 20
    _VMEM_CAP = cap
    return cap


def _vmem_est(th, wo, c_in, tco, out_bytes):
    """VMEM footprint estimate for one pipelined grid step (double-buffered)."""
    k = 3 * c_in
    in_blks = (2 * th + 1) * wo * k * 2         # even-main + odd + halo (bf16)
    out_blk = th * wo * tco * out_bytes
    w_blk = 3 * k * tco * 2                     # counted x2 for safety even when
    bias_blk = tco * 4                          # resident (pipeline allocates 2)
    acc = th * wo * tco * 4                     # f32 scratch accumulator
    return 2 * (in_blks + out_blk + w_blk + bias_blk) + acc


def _conv3x3s2_kernel(ev_ref, halo_ref, od_ref, w_ref, b_ref, o_ref, acc_ref,
                      *, th, wo):
    """One (C_out-tile, batch, row-tile) block of the stride-2 3x3 conv.

    ev_ref  : (1, th, 1, wo, K) bf16  even-parity padded rows i*th .. i*th+th-1
    halo_ref: (1, 1, 1, wo, K)  bf16  even-parity padded row   i*th+th (halo)
    od_ref  : (1, th, 1, wo, K) bf16  odd-parity  padded rows  i*th .. i*th+th-1
    w_ref   : (3, K, TCO)       bf16  per-kh weights, K index = kw*C_in + ci
    b_ref   : (1, TCO)          f32
    o_ref   : (1, th*wo, TCO)   out dtype, lane dense (TCO % 128 == 0)
    acc_ref : (th*wo, TCO)      f32 VMEM scratch accumulator
    """
    k = ev_ref.shape[-1]
    hw = th * wo
    even = ev_ref[0].reshape(hw, k)
    odd = od_ref[0].reshape(hw, k)
    halo = halo_ref[0].reshape(wo, k)
    # kh = 0 tap; bias is folded into the first accumulator store.
    acc_ref[...] = (jnp.dot(even, w_ref[0], preferred_element_type=jnp.float32)
                    + b_ref[...])
    # kh = 1 tap.
    acc_ref[...] += jnp.dot(odd, w_ref[1], preferred_element_type=jnp.float32)
    # kh = 2 tap: even-parity rows shifted down by one output row; the tile's
    # last output row takes its row from the 1-row halo block.
    if th > 1:
        acc_ref[0:(th - 1) * wo, :] += jnp.dot(
            even[wo:, :], w_ref[2], preferred_element_type=jnp.float32)
    acc_ref[(th - 1) * wo:hw, :] += jnp.dot(
        halo, w_ref[2], preferred_element_type=jnp.float32)
    o_ref[0] = acc_ref[...].astype(o_ref.dtype)


@jax.jit
def downsample(x_nchw, w_oihw, bias):
    """Conv2d(kernel=3, stride=2, padding=1, bias=True) forward, NCHW in/out."""
    N, C_in, H, W = x_nchw.shape
    C_out = w_oihw.shape[0]
    Ho = (H - 1) // 2 + 1
    Wo = (W - 1) // 2 + 1
    K = 3 * C_in

    cap = _vmem_capacity_bytes()
    out_dtype = jnp.bfloat16 if x_nchw.dtype == jnp.bfloat16 else jnp.float32
    out_bytes = 2 if out_dtype == jnp.bfloat16 else 4

    # ---- output-channel tiling / weight residency -------------------------
    C_outp = _round_up(C_out, 128)              # lane-dense output channels
    if 3 * K * C_outp * 2 <= max(4 << 20, cap // 8):
        TCO = C_outp                            # weights fully VMEM-resident
    else:
        C_outp = _round_up(C_out, 256)          # avoid tiny 128-wide C_out tiles
        TCO = 512 if C_outp % 512 == 0 else 256
    n_co = C_outp // TCO

    # ---- row tiling from a generation-aware VMEM budget --------------------
    Wo_p = _round_up(Wo, 16)                    # packed-sublane aligned row stride
    budget = int(0.55 * cap)
    TH = Ho
    while TH > 1 and _vmem_est(TH, Wo_p, C_in, TCO, out_bytes) > budget:
        TH = -(-TH // 2)
    # Keep >= 2 grid cells so both v7x TensorCores get work even at batch 1.
    while TH > 1 and n_co * N * (-(-Ho // TH)) < 2:
        TH = -(-TH // 2)
    n_t = -(-Ho // TH)
    Ho_p = n_t * TH

    # ---- layout glue (XLA): NCHW -> NHWC bf16, zero pad, kw-fold -----------
    x = jnp.transpose(x_nchw, (0, 2, 3, 1)).astype(jnp.bfloat16)
    Hp = 2 * Ho_p + 2
    Wp = 2 * Wo_p + 2
    xp = jnp.pad(x, ((0, 0), (1, Hp - 1 - H), (1, Wp - 1 - W), (0, 0)))
    # Fold the 3 kernel columns into the channel axis (kw-major, K = 3*C_in):
    #   cols[n, h, c, kw*C_in + ci] = xp[n, h, 2*c + kw, ci]
    cols = jnp.stack([xp[:, :, kw:kw + 2 * Wo_p:2, :] for kw in range(3)], axis=3)
    cols = cols.reshape(N, Hp, Wo_p, K)
    # Free reshape splitting the padded rows by parity (dim 2 = parity 0/1), so
    # every per-kh tap is a plain BlockSpec window; no halo strips, no extra pass.
    cols = cols.reshape(N, Ho_p + 1, 2, Wo_p, K)

    # Weights (C_out, C_in, 3, 3) -> (3, 3*C_in, C_outp) bf16, K = kw*C_in + ci.
    w = jnp.transpose(w_oihw, (2, 3, 1, 0)).reshape(3, K, C_out)
    w = jnp.pad(w, ((0, 0), (0, 0), (0, C_outp - C_out))).astype(jnp.bfloat16)
    bvec = jnp.pad(bias, (0, C_outp - C_out)).reshape(1, C_outp).astype(jnp.float32)

    hw = TH * Wo_p
    vmem_limit = int(min(0.92 * cap,
                         max(0.85 * cap,
                             _vmem_est(TH, Wo_p, C_in, TCO, out_bytes) + (4 << 20))))
    kernel = functools.partial(_conv3x3s2_kernel, th=TH, wo=Wo_p)
    out = pl.pallas_call(
        kernel,
        out_shape=jax.ShapeDtypeStruct((N, Ho_p * Wo_p, C_outp), out_dtype),
        grid_spec=pltpu.PrefetchScalarGridSpec(
            num_scalar_prefetch=0,
            # C_out tiles on the slowest axis: the weight block index changes only
            # n_co times, so the full weight tensor is DMA'd from HBM exactly once.
            grid=(n_co, N, n_t),
            in_specs=[
                # even-parity rows [i*TH, i*TH+TH)      (kh=0 and most of kh=2)
                pl.BlockSpec((1, TH, 1, Wo_p, K), lambda j, n, i: (n, i, 0, 0, 0)),
                # even-parity halo row i*TH+TH          (last row of the kh=2 tap)
                pl.BlockSpec((1, 1, 1, Wo_p, K),
                             lambda j, n, i: (n, i * TH + TH, 0, 0, 0)),
                # odd-parity rows  [i*TH, i*TH+TH)      (kh=1)
                pl.BlockSpec((1, TH, 1, Wo_p, K), lambda j, n, i: (n, i, 1, 0, 0)),
                pl.BlockSpec((3, K, TCO), lambda j, n, i: (0, 0, j)),
                pl.BlockSpec((1, TCO), lambda j, n, i: (0, j)),
            ],
            out_specs=pl.BlockSpec((1, hw, TCO), lambda j, n, i: (n, i, j)),
            scratch_shapes=[pltpu.VMEM((hw, TCO), jnp.float32)],
        ),
        compiler_params=pltpu.CompilerParams(
            dimension_semantics=("parallel", "parallel", "parallel"),
            vmem_limit_bytes=vmem_limit,
        ),
    )(cols, cols, cols, w, bvec)

    # (N, Ho_p*Wo_p, C_outp) -> (N, C_out, Ho, Wo); padded rows/cols/channels
    # (which hold bias / zero) are sliced off here.
    out = out.reshape(N, Ho_p, Wo_p, C_outp)[:, :Ho, :Wo, :C_out]
    return jnp.transpose(out, (0, 3, 1, 2)).astype(x_nchw.dtype)


if __name__ == "__main__":
    N, C_in, C_out, H, W = 2, 4, 8, 16, 16

    key = jax.random.PRNGKey(0)
    kx, kwt, kb = jax.random.split(key, 3)

    x = jax.random.normal(kx, (N, C_in, H, W), dtype=jnp.float32)

    # PyTorch-style uniform init (bound = 1/sqrt(fan_in)).
    fan_in = C_in * 3 * 3
    bound = 1.0 / (fan_in ** 0.5)
    weight = jax.random.uniform(kwt, (C_out, C_in, 3, 3), minval=-bound, maxval=bound,
                                dtype=jnp.float32)
    bias = jax.random.uniform(kb, (C_out,), minval=-bound, maxval=bound,
                              dtype=jnp.float32)

    out = jax.block_until_ready(downsample(x, weight, bias))
    assert out.shape == (N, C_out, H // 2, W // 2), out.shape

    conv = functools.partial(
        jax.lax.conv_general_dilated, window_strides=(2, 2), padding=((1, 1), (1, 1)),
        dimension_numbers=("NCHW", "OIHW", "NCHW"),
        precision=jax.lax.Precision.HIGHEST)

    # Exact-math check: same bf16-rounded operands as the kernel, f32 accumulation.
    xq = x.astype(jnp.bfloat16).astype(jnp.float32)
    wq = weight.astype(jnp.bfloat16).astype(jnp.float32)
    ref_q = conv(xq, wq) + bias[None, :, None, None]
    assert jnp.allclose(out, ref_q, atol=1e-3, rtol=1e-3), \
        "mismatch vs bf16-operand conv reference"

    # Sanity check against the full-f32 module forward (only operand rounding differs).
    ref = conv(x, weight) + bias[None, :, None, None]
    assert jnp.allclose(out, ref, atol=5e-2, rtol=5e-2), \
        "mismatch vs f32 conv reference"

    print("KERNEL_OK")
</pallas_src>

<mosaic_0001>
module attributes {stable_mosaic.version = 11 : i64} {
  func.func @_conv3x3s2_kernel(%arg0: i32, %arg1: i32, %arg2: i32, %arg3: memref<1x8x1x16x12xbf16, #tpu.memory_space<vmem>>, %arg4: memref<1x1x1x16x12xbf16, #tpu.memory_space<vmem>>, %arg5: memref<1x8x1x16x12xbf16, #tpu.memory_space<vmem>>, %arg6: memref<3x12x128xbf16, #tpu.memory_space<vmem>>, %arg7: memref<1x128xf32, #tpu.memory_space<vmem>>, %arg8: memref<1x128x128xf32, #tpu.memory_space<vmem>>, %arg9: memref<128x128xf32, #tpu.memory_space<vmem>>) attributes {dimension_semantics = [#tpu.dimension_semantics<parallel>, #tpu.dimension_semantics<parallel>, #tpu.dimension_semantics<parallel>], iteration_bounds = array<i64: 1, 2, 1>, scalar_prefetch = 0 : i64, scratch_operands = 1 : i64, tpu.core_type = #tpu.core_type<tc>, window_params = [{transform_indices = @transform_0, window_bounds = array<i64: 1, 8, 1, 16, 12>}, {transform_indices = @transform_1, window_bounds = array<i64: 1, 1, 1, 16, 12>}, {transform_indices = @transform_2, window_bounds = array<i64: 1, 8, 1, 16, 12>}, {transform_indices = @transform_3, window_bounds = array<i64: 3, 12, 128>}, {transform_indices = @transform_4, window_bounds = array<i64: 1, 128>}, {transform_indices = @transform_5, window_bounds = array<i64: 1, 128, 128>}]} {
    %c0 = arith.constant 0 : index
    %c0_0 = arith.constant 0 : index
    %c0_1 = arith.constant 0 : index
    %c0_2 = arith.constant 0 : index
    %c0_3 = arith.constant 0 : index
    %0 = vector.load %arg3[%c0, %c0_0, %c0_1, %c0_2, %c0_3] : memref<1x8x1x16x12xbf16, #tpu.memory_space<vmem>>, vector<1x8x1x16x12xbf16>
    %1 = vector.shape_cast %0 : vector<1x8x1x16x12xbf16> to vector<8x1x16x12xbf16>
    %2 = vector.shape_cast %1 : vector<8x1x16x12xbf16> to vector<128x12xbf16>
    %c0_4 = arith.constant 0 : index
    %c0_5 = arith.constant 0 : index
    %c0_6 = arith.constant 0 : index
    %c0_7 = arith.constant 0 : index
    %c0_8 = arith.constant 0 : index
    %3 = vector.load %arg5[%c0_4, %c0_5, %c0_6, %c0_7, %c0_8] : memref<1x8x1x16x12xbf16, #tpu.memory_space<vmem>>, vector<1x8x1x16x12xbf16>
    %4 = vector.shape_cast %3 : vector<1x8x1x16x12xbf16> to vector<8x1x16x12xbf16>
    %5 = vector.shape_cast %4 : vector<8x1x16x12xbf16> to vector<128x12xbf16>
    %c0_9 = arith.constant 0 : index
    %c0_10 = arith.constant 0 : index
    %c0_11 = arith.constant 0 : index
    %c0_12 = arith.constant 0 : index
    %c0_13 = arith.constant 0 : index
    %6 = vector.load %arg4[%c0_9, %c0_10, %c0_11, %c0_12, %c0_13] : memref<1x1x1x16x12xbf16, #tpu.memory_space<vmem>>, vector<1x1x1x16x12xbf16>
    %7 = vector.shape_cast %6 : vector<1x1x1x16x12xbf16> to vector<1x1x16x12xbf16>
    %8 = vector.shape_cast %7 : vector<1x1x16x12xbf16> to vector<16x12xbf16>
    %c0_14 = arith.constant 0 : index
    %c0_15 = arith.constant 0 : index
    %c0_16 = arith.constant 0 : index
    %9 = vector.load %arg6[%c0_14, %c0_15, %c0_16] : memref<3x12x128xbf16, #tpu.memory_space<vmem>>, vector<1x12x128xbf16>
    %10 = vector.shape_cast %9 : vector<1x12x128xbf16> to vector<12x128xbf16>
    %cst = arith.constant dense<0.000000e+00> : vector<128x128xf32>
    %11 = tpu.matmul %2, %10, %cst {dimension_numbers = #tpu.dot_dimension_numbers<[1], [0], [0], [1], [0, 0, 1, 1], [], []>} : vector<128x12xbf16>, vector<12x128xbf16>, vector<128x128xf32> -> vector<128x128xf32>
    %c0_17 = arith.constant 0 : index
    %c0_18 = arith.constant 0 : index
    %12 = vector.load %arg7[%c0_17, %c0_18] : memref<1x128xf32, #tpu.memory_space<vmem>>, vector<1x128xf32>
    %13 = vector.broadcast %12 : vector<1x128xf32> to vector<128x128xf32>
    %14 = arith.addf %11, %13 : vector<128x128xf32>
    %c0_19 = arith.constant 0 : index
    %c0_20 = arith.constant 0 : index
    %15 = vector.load %arg9[%c0_19, %c0_20] : memref<128x128xf32, #tpu.memory_space<vmem>>, vector<128x128xf32>
    tpu.vector_store %arg9[%c0_19, %c0_20], %14 {strides = array<i32>} : memref<128x128xf32, #tpu.memory_space<vmem>>, vector<128x128xf32>,
    %c0_21 = arith.constant 0 : index
    %c0_22 = arith.constant 0 : index
    %16 = vector.load %arg9[%c0_21, %c0_22] : memref<128x128xf32, #tpu.memory_space<vmem>>, vector<128x128xf32>
    %c1 = arith.constant 1 : index
    %c0_23 = arith.constant 0 : index
    %c0_24 = arith.constant 0 : index
    %17 = vector.load %arg6[%c1, %c0_23, %c0_24] : memref<3x12x128xbf16, #tpu.memory_space<vmem>>, vector<1x12x128xbf16>
    %18 = vector.shape_cast %17 : vector<1x12x128xbf16> to vector<12x128xbf16>
    %cst_25 = arith.constant dense<0.000000e+00> : vector<128x128xf32>
    %19 = tpu.matmul %5, %18, %cst_25 {dimension_numbers = #tpu.dot_dimension_numbers<[1], [0], [0], [1], [0, 0, 1, 1], [], []>} : vector<128x12xbf16>, vector<12x128xbf16>, vector<128x128xf32> -> vector<128x128xf32>
    %20 = arith.addf %16, %19 : vector<128x128xf32>
    %c0_26 = arith.constant 0 : index
    %c0_27 = arith.constant 0 : index
    %21 = vector.load %arg9[%c0_26, %c0_27] : memref<128x128xf32, #tpu.memory_space<vmem>>, vector<128x128xf32>
    tpu.vector_store %arg9[%c0_26, %c0_27], %20 {strides = array<i32>} : memref<128x128xf32, #tpu.memory_space<vmem>>, vector<128x128xf32>,
    %c0_28 = arith.constant 0 : index
    %c0_29 = arith.constant 0 : index
    %22 = vector.load %arg9[%c0_28, %c0_29] : memref<128x128xf32, #tpu.memory_space<vmem>>, vector<112x128xf32>
    %23 = vector.extract_strided_slice %2 {offsets = [16, 0], sizes = [112, 12], strides = [1, 1]} : vector<128x12xbf16> to vector<112x12xbf16>
    %c2 = arith.constant 2 : index
    %c0_30 = arith.constant 0 : index
    %c0_31 = arith.constant 0 : index
    %24 = vector.load %arg6[%c2, %c0_30, %c0_31] : memref<3x12x128xbf16, #tpu.memory_space<vmem>>, vector<1x12x128xbf16>
    %25 = vector.shape_cast %24 : vector<1x12x128xbf16> to vector<12x128xbf16>
    %cst_32 = arith.constant dense<0.000000e+00> : vector<112x128xf32>
    %26 = tpu.matmul %23, %25, %cst_32 {dimension_numbers = #tpu.dot_dimension_numbers<[1], [0], [0], [1], [0, 0, 1, 1], [], []>} : vector<112x12xbf16>, vector<12x128xbf16>, vector<112x128xf32> -> vector<112x128xf32>
    %27 = arith.addf %22, %26 : vector<112x128xf32>
    %c0_33 = arith.constant 0 : index
    %c0_34 = arith.constant 0 : index
    %28 = vector.load %arg9[%c0_33, %c0_34] : memref<128x128xf32, #tpu.memory_space<vmem>>, vector<112x128xf32>
    tpu.vector_store %arg9[%c0_33, %c0_34], %27 {strides = array<i32>} : memref<128x128xf32, #tpu.memory_space<vmem>>, vector<112x128xf32>,
    %c112 = arith.constant 112 : index
    %c0_35 = arith.constant 0 : index
    %29 = vector.load %arg9[%c112, %c0_35] : memref<128x128xf32, #tpu.memory_space<vmem>>, vector<16x128xf32>
    %c2_36 = arith.constant 2 : index
    %c0_37 = arith.constant 0 : index
    %c0_38 = arith.constant 0 : index
    %30 = vector.load %arg6[%c2_36, %c0_37, %c0_38] : memref<3x12x128xbf16, #tpu.memory_space<vmem>>, vector<1x12x128xbf16>
    %31 = vector.shape_cast %30 : vector<1x12x128xbf16> to vector<12x128xbf16>
    %cst_39 = arith.constant dense<0.000000e+00> : vector<16x128xf32>
    %32 = tpu.matmul %8, %31, %cst_39 {dimension_numbers = #tpu.dot_dimension_numbers<[1], [0], [0], [1], [0, 0, 1, 1], [], []>} : vector<16x12xbf16>, vector<12x128xbf16>, vector<16x128xf32> -> vector<16x128xf32>
    %33 = arith.addf %29, %32 : vector<16x128xf32>
    %c112_40 = arith.constant 112 : index
    %c0_41 = arith.constant 0 : index
    %34 = vector.load %arg9[%c112_40, %c0_41] : memref<128x128xf32, #tpu.memory_space<vmem>>, vector<16x128xf32>
    tpu.vector_store %arg9[%c112_40, %c0_41], %33 {strides = array<i32>} : memref<128x128xf32, #tpu.memory_space<vmem>>, vector<16x128xf32>,
    %c0_42 = arith.constant 0 : index
    %c0_43 = arith.constant 0 : index
    %35 = vector.load %arg9[%c0_42, %c0_43] : memref<128x128xf32, #tpu.memory_space<vmem>>, vector<128x128xf32>
    %c0_44 = arith.constant 0 : index
    %c0_45 = arith.constant 0 : index
    %c0_46 = arith.constant 0 : index
    %36 = vector.load %arg8[%c0_44, %c0_45, %c0_46] : memref<1x128x128xf32, #tpu.memory_space<vmem>>, vector<1x128x128xf32>
    %37 = vector.shape_cast %36 : vector<1x128x128xf32> to vector<128x128xf32>
    %38 = vector.shape_cast %35 : vector<128x128xf32> to vector<1x128x128xf32>
    tpu.vector_store %arg8[%c0_44, %c0_45, %c0_46], %38 {strides = array<i32>} : memref<1x128x128xf32, #tpu.memory_space<vmem>>, vector<1x128x128xf32>,
    return
  }
  func.func @transform_0(%arg0: i32, %arg1: i32, %arg2: i32) -> (i32, i32, i32, i32, i32) {
    %c0_i32 = arith.constant 0 : i32
    %c0_i32_0 = arith.constant 0 : i32
    %c0_i32_1 = arith.constant 0 : i32
    %c0_i32_2 = arith.constant 0 : i32
    return %arg1, %arg2, %c0_i32, %c0_i32_0, %c0_i32_1 : i32, i32, i32, i32, i32
  }
  func.func @transform_1(%arg0: i32, %arg1: i32, %arg2: i32) -> (i32, i32, i32, i32, i32) {
    %c8_i32 = arith.constant 8 : i32
    %0 = arith.muli %arg2, %c8_i32 : i32
    %c8_i32_0 = arith.constant 8 : i32
    %1 = arith.addi %0, %c8_i32_0 : i32
    %c0_i32 = arith.constant 0 : i32
    %c0_i32_1 = arith.constant 0 : i32
    %c0_i32_2 = arith.constant 0 : i32
    %c0_i32_3 = arith.constant 0 : i32
    return %arg1, %1, %c0_i32, %c0_i32_1, %c0_i32_2 : i32, i32, i32, i32, i32
  }
  func.func @transform_2(%arg0: i32, %arg1: i32, %arg2: i32) -> (i32, i32, i32, i32, i32) {
    %c1_i32 = arith.constant 1 : i32
    %c0_i32 = arith.constant 0 : i32
    %c0_i32_0 = arith.constant 0 : i32
    %c0_i32_1 = arith.constant 0 : i32
    return %arg1, %arg2, %c1_i32, %c0_i32, %c0_i32_0 : i32, i32, i32, i32, i32
  }
  func.func @transform_3(%arg0: i32, %arg1: i32, %arg2: i32) -> (i32, i32, i32) {
    %c0_i32 = arith.constant 0 : i32
    %c0_i32_0 = arith.constant 0 : i32
    %c0_i32_1 = arith.constant 0 : i32
    return %c0_i32, %c0_i32_0, %arg0 : i32, i32, i32
  }
  func.func @transform_4(%arg0: i32, %arg1: i32, %arg2: i32) -> (i32, i32) {
    %c0_i32 = arith.constant 0 : i32
    %c0_i32_0 = arith.constant 0 : i32
    return %c0_i32, %arg0 : i32, i32
  }
  func.func @transform_5(%arg0: i32, %arg1: i32, %arg2: i32) -> (i32, i32, i32) {
    %c0_i32 = arith.constant 0 : i32
    return %arg1, %arg2, %arg0 : i32, i32, i32
  }
}

</mosaic_0001>

<llo_original>
// kernel: downsample.1
$region0: #{downsample.1}
  #allocation0 [shape = 'u32[]', space=smem, size = 0x4, offset = 0x4, fixed_abs, tag = 'smem constant byte address 0x4 - core index']
  #allocation1 [shape = 'u32[72,128]{1,0:T(1,128)}', space=vmem, size = 0x9000, scoped, tag = 'internal scratch']
  #allocation2 [shape = 'f32[128,128]{1,0:T(8,128)}', space=vmem, size = 0x10000, scoped, tag = 'scratch operand']
  %s0 = inlined_call_operand.vmem [shape: bf16[2,9,2,16,12], index: 0, kind: input, shape index: {}, may-alias: {0,1,2}]
  %s1 = inlined_call_operand.vmem [shape: bf16[2,9,2,16,12], index: 1, kind: input, shape index: {}, may-alias: {0,1,2}]
  %s2 = inlined_call_operand.vmem [shape: bf16[2,9,2,16,12], index: 2, kind: input, shape index: {}, may-alias: {0,1,2}]
  %s3 = inlined_call_operand.vmem [shape: bf16[3,12,128], index: 3, kind: input, shape index: {}]
  %s4 = inlined_call_operand.vmem [shape: f32[1,128], index: 4, kind: input, shape index: {}]
  %s5 = inlined_call_operand.vmem [shape: f32[2,128,128], index: 5, kind: output, shape index: {}]
  %s6 = sld [smem:[#allocation0]]
  $region177: #{downsample.1} parent=0
    _
  %s8 = ssub.s32 1, %s6
  %s9 = scalar_select 0, %s8, %s6
  $region1: #{downsample.1} parent=0
    #allocation3 [shape = 'u8[65536]{0}', space=vmem, size = 0x10000, scoped, tag = 'input window, operand 0']
    #allocation4 [shape = 'u8[65536]{0}', space=vmem, size = 0x10000, scoped, tag = 'input window, operand 2']
    loop: start=0, step=1, limit=4
    $region2: #{downsample.1} parent=1 // loop_pre_header
      _
    $region3: #{downsample.1} parent=1 // loop_header
      %s11 = sphi 0, %s15
      %p12 = scmp.ge.s32.totalorder %s11, 4
      %s18 = sphi 0, %s37
      %s19 = sphi 0, %s33
      %s20 = sphi 0, %s29
      %s21 = sphi 0, %s18
      %s22 = sphi 0, %s19
      %s23 = sphi 0, %s20
      %s24 = sphi 0, %s21
      %s25 = sphi 0, %s22
      %s26 = sphi 0, %s23
      %s42 = sphi 0, %s44
      %s45 = sphi 0, %s42
      %s46 = sphi 0, %s45
      %s62 = sphi 0, %s46
      %s74 = sphi 0, %s76
      %s77 = sphi 0, %s74
      %s78 = sphi 0, %s77
      %s94 = sphi 0, %s78
      %s102 = sphi 0, %s104
      %s105 = sphi 0, %s102
      %s106 = sphi 0, %s105
      %s122 = sphi 0, %s106
      %s128 = sphi 0, %s130
      %s131 = sphi 0, %s128
      %s132 = sphi 0, %s131
      %s148 = sphi 0, %s132
      %s154 = sphi 0, %s156
      %s157 = sphi 0, %s154
      %s158 = sphi 0, %s157
      %s174 = sphi 0, %s158
      %s184 = sphi 0, %s186
      %s187 = sphi 0, %s184
      %s188 = sphi 0, %s187
      %s204 = sphi 0, %s188
    $region4: #{downsample.1} parent=1 // loop_header_branch
      %14 = sbr.rel (%p12) target = $region8
    $region5: #{downsample.1} parent=1 // loop_body
      %s16 = ssub.s32 %s11, 1
      %s17 = ssub.s32 %s11, 2
      %s27 = sadd.s32 1, %s20
      %p28 = scmp.ge.s32.totalorder %s27, 1
      %s29 = scalar_select %p28, 0, %s27
      %s30 = sadd.s32 1, %s19
      %s31 = scalar_select %p28, %s30, %s19
      %p32 = scmp.ge.s32.totalorder %s31, 2
      %s33 = scalar_select %p32, 0, %s31
      %s34 = sadd.s32 1, %s18
      %s35 = scalar_select %p32, %s34, %s18
      %p36 = scmp.ge.s32.totalorder %s35, 1
      %s37 = scalar_select %p36, 0, %s35
      %s38 = ssub.s32 %s19, %s33
      %s39 = ssub.s32 %s20, %s29
      %s40 = sor.u32 %s38, %s39
      %p41 = scmp.eq.s32.totalorder %s40, 0
      %s43 = sadd.s32 %s42, 1
      %s44 = scalar_select %p41, %s42, %s43
      %p47 = pneg %p41
      %p48 = scmp.eq.s32.totalorder %s11, 1
      %p49 = por %p47, %p48
      %p50 = scmp.ne.s32.totalorder %s42, %s45
      %p51 = scmp.eq.s32.totalorder %s11, 0
      %p52 = por %p50, %p51
      %p53 = scmp.ne.s32.totalorder %s42, %s45
      %p54 = scmp.eq.s32.totalorder %s16, 1
      %p55 = por %p53, %p54
      %p56 = scmp.ne.s32.totalorder %s45, %s46
      %p57 = scmp.eq.s32.totalorder %s16, 0
      %p58 = por %p56, %p57
      %p59 = scmp.ne.s32.totalorder %s45, %s46
      %p60 = scmp.eq.s32.totalorder %s17, 1
      %p61 = por %p59, %p60
      %p63 = scmp.ne.s32.totalorder %s46, %s62
      %p64 = scmp.eq.s32.totalorder %s17, 0
      %p65 = por %p63, %p64
      %s66 = smul.u32 %s20, 8
      %s67 = sadd.s32 %s66, 8
      %s68 = smul.u32 %s29, 8
      %s69 = sadd.s32 %s68, 8
      %s70 = ssub.s32 %s19, %s33
      %s71 = ssub.s32 %s67, %s69
      %s72 = sor.u32 %s70, %s71
      %p73 = scmp.eq.s32.totalorder %s72, 0
      %s75 = sadd.s32 %s74, 1
      %s76 = scalar_select %p73, %s74, %s75
      %p79 = pneg %p73
      %p80 = scmp.eq.s32.totalorder %s11, 1
      %p81 = por %p79, %p80
      %p82 = scmp.ne.s32.totalorder %s74, %s77
      %p83 = scmp.eq.s32.totalorder %s11, 0
      %p84 = por %p82, %p83
      %p85 = scmp.ne.s32.totalorder %s74, %s77
      %p86 = scmp.eq.s32.totalorder %s16, 1
      %p87 = por %p85, %p86
      %p88 = scmp.ne.s32.totalorder %s77, %s78
      %p89 = scmp.eq.s32.totalorder %s16, 0
      %p90 = por %p88, %p89
      %p91 = scmp.ne.s32.totalorder %s77, %s78
      %p92 = scmp.eq.s32.totalorder %s17, 1
      %p93 = por %p91, %p92
      %p95 = scmp.ne.s32.totalorder %s78, %s94
      %p96 = scmp.eq.s32.totalorder %s17, 0
      %p97 = por %p95, %p96
      %s98 = ssub.s32 %s19, %s33
      %s99 = ssub.s32 %s20, %s29
      %s100 = sor.u32 %s98, %s99
      %p101 = scmp.eq.s32.totalorder %s100, 0
      %s103 = sadd.s32 %s102, 1
      %s104 = scalar_select %p101, %s102, %s103
      %p107 = pneg %p101
      %p108 = scmp.eq.s32.totalorder %s11, 1
      %p109 = por %p107, %p108
      %p110 = scmp.ne.s32.totalorder %s102, %s105
      %p111 = scmp.eq.s32.totalorder %s11, 0
      %p112 = por %p110, %p111
      %p113 = scmp.ne.s32.totalorder %s102, %s105
      %p114 = scmp.eq.s32.totalorder %s16, 1
      %p115 = por %p113, %p114
      %p116 = scmp.ne.s32.totalorder %s105, %s106
      %p117 = scmp.eq.s32.totalorder %s16, 0
      %p118 = por %p116, %p117
      %p119 = scmp.ne.s32.totalorder %s105, %s106
      %p120 = scmp.eq.s32.totalorder %s17, 1
      %p121 = por %p119, %p120
      %p123 = scmp.ne.s32.totalorder %s106, %s122
      %p124 = scmp.eq.s32.totalorder %s17, 0
      %p125 = por %p123, %p124
      %s126 = ssub.s32 %s18, %s37
      %p127 = scmp.eq.s32.totalorder %s126, 0
      %s129 = sadd.s32 %s128, 1
      %s130 = scalar_select %p127, %s128, %s129
      %p133 = pneg %p127
      %p134 = scmp.eq.s32.totalorder %s11, 1
      %p135 = por %p133, %p134
      %p136 = scmp.ne.s32.totalorder %s128, %s131
      %p137 = scmp.eq.s32.totalorder %s11, 0
      %p138 = por %p136, %p137
      %p139 = scmp.ne.s32.totalorder %s128, %s131
      %p140 = scmp.eq.s32.totalorder %s16, 1
      %p141 = por %p139, %p140
      %p142 = scmp.ne.s32.totalorder %s131, %s132
      %p143 = scmp.eq.s32.totalorder %s16, 0
      %p144 = por %p142, %p143
      %p145 = scmp.ne.s32.totalorder %s131, %s132
      %p146 = scmp.eq.s32.totalorder %s17, 1
      %p147 = por %p145, %p146
      %p149 = scmp.ne.s32.totalorder %s132, %s148
      %p150 = scmp.eq.s32.totalorder %s17, 0
      %p151 = por %p149, %p150
      %s152 = ssub.s32 %s18, %s37
      %p153 = scmp.eq.s32.totalorder %s152, 0
      %s155 = sadd.s32 %s154, 1
      %s156 = scalar_select %p153, %s154, %s155
      %p159 = pneg %p153
      %p160 = scmp.eq.s32.totalorder %s11, 1
      %p161 = por %p159, %p160
      %p162 = scmp.ne.s32.totalorder %s154, %s157
      %p163 = scmp.eq.s32.totalorder %s11, 0
      %p164 = por %p162, %p163
      %p165 = scmp.ne.s32.totalorder %s154, %s157
      %p166 = scmp.eq.s32.totalorder %s16, 1
      %p167 = por %p165, %p166
      %p168 = scmp.ne.s32.totalorder %s157, %s158
      %p169 = scmp.eq.s32.totalorder %s16, 0
      %p170 = por %p168, %p169
      %p171 = scmp.ne.s32.totalorder %s157, %s158
      %p172 = scmp.eq.s32.totalorder %s17, 1
      %p173 = por %p171, %p172
      %p175 = scmp.ne.s32.totalorder %s158, %s174
      %p176 = scmp.eq.s32.totalorder %s17, 0
      %p177 = por %p175, %p176
      %s178 = ssub.s32 %s19, %s33
      %s179 = ssub.s32 %s20, %s29
      %s180 = sor.u32 %s178, %s179
      %s181 = ssub.s32 %s18, %s37
      %s182 = sor.u32 %s180, %s181
      %p183 = scmp.eq.s32.totalorder %s182, 0
      %s185 = sadd.s32 %s184, 1
      %s186 = scalar_select %p183, %s184, %s185
      %p189 = pneg %p183
      %p190 = scmp.eq.s32.totalorder %s11, 1
      %p191 = por %p189, %p190
      %p192 = scmp.ne.s32.totalorder %s184, %s187
      %p193 = scmp.eq.s32.totalorder %s11, 0
      %p194 = por %p192, %p193
      %p195 = scmp.ne.s32.totalorder %s184, %s187
      %p196 = scmp.eq.s32.totalorder %s16, 1
      %p197 = por %p195, %p196
      %p198 = scmp.ne.s32.totalorder %s187, %s188
      %p199 = scmp.eq.s32.totalorder %s16, 0
      %p200 = por %p198, %p199
      %p201 = scmp.ne.s32.totalorder %s187, %s188
      %p202 = scmp.eq.s32.totalorder %s17, 1
      %p203 = por %p201, %p202
      %p205 = scmp.ne.s32.totalorder %s188, %s204
      %p206 = scmp.eq.s32.totalorder %s17, 0
      %p207 = por %p205, %p206
      %p208 = scmp.le.s32.totalorder 1, %s11
      %p209 = scmp.lt.s32.totalorder %s11, 3
      %p210 = pnand %p208, %p209
      %p211 = pneg %p210
      // Predicated region
      $region9: #{downsample.1} parent=5 // pred_check
        _
      $region10: #{downsample.1} parent=5 // pred_check_branch
        %213 = sbr.rel (%p210) target = $region12
      $region11: #{downsample.1} parent=5 // pred_region
        %s214 = ssub.s32 %s11, 1
        // Predicated region
        $region13: #{downsample.1} parent=11 // pred_check
          %p215 = pneg %p144
        $region14: #{downsample.1} parent=11 // pred_check_branch
          %217 = sbr.rel (%p215) target = $region16
        $region15: #{downsample.1} parent=11 // pred_region
          %p218 = scmp.lt.s32.totalorder %s21, 0
          %s219 = scalar_select %p218, %s21, 0
          %s220 = smul.addr %s219, 4
          %s221 = scalar_lea.vmem %s3, %s220
        $region16: #{downsample.1} parent=11 // pred_fallthru
          _
        // Predicated region
        $region17: #{downsample.1} parent=11 // pred_check
          %p222 = pneg %p170
        $region18: #{downsample.1} parent=11 // pred_check_branch
          %224 = sbr.rel (%p222) target = $region20
        $region19: #{downsample.1} parent=11 // pred_region
          %p225 = scmp.lt.s32.totalorder %s21, 0
          %s226 = scalar_select %p225, %s21, 0
          %s227 = scalar_lea.vmem %s4, %s226
        $region20: #{downsample.1} parent=11 // pred_fallthru
          _
      $region12: #{downsample.1} parent=5 // pred_fallthru
        _
      %p228 = scmp.lt.s32.totalorder %s11, 2
      // Predicated region
      $region21: #{downsample.1} parent=5 // pred_check
        %p229 = pneg %p228
      $region22: #{downsample.1} parent=5 // pred_check_branch
        %231 = sbr.rel (%p229) target = $region24
      $region23: #{downsample.1} parent=5 // pred_region
        // Predicated region
        $region25: #{downsample.1} parent=23 // pred_check
          %p232 = pneg %p52
        $region26: #{downsample.1} parent=23 // pred_check_branch
          %234 = sbr.rel (%p232) target = $region28
        $region27: #{downsample.1} parent=23 // pred_region
          %s235 = sand.u32 %s42, 1
          %s236 = sand.u32 %s42, 1
          %s237 = smul.addr %s236, 64
          %s238 = scalar_lea.vmem [#allocation3], %s237
          %s239 = smul.u32 8, %s20
          %s240 = ssub.s32 9, %s239
          %p241 = scmp.lt.s32.totalorder %s240, 8
          %s242 = scalar_select %p241, %s240, 8
          %s243 = smul.u32 4, %s242
          %s244 = smul.u32 %s243, 2
          %p245 = scmp.ne.s32.totalorder 0, %s244
          %s246 = smul.addr %s239, 4
          %s247 = smul.addr %s19, 36
          %s248 = sadd.s32 %s246, %s247
          %s249 = smul.addr %s248, 4
          %s250 = scalar_lea.vmem %s0, %s249
          // Predicated region
          $region29: #{downsample.1} parent=27 // pred_check
            %p251 = pneg %p245
          $region30: #{downsample.1} parent=27 // pred_check_branch
            %253 = sbr.rel (%p251) target = $region32
          $region31: #{downsample.1} parent=27 // pred_region
            // Predicated region
            $region33: #{downsample.1} parent=31 // pred_check
              _
            $region34: #{downsample.1} parent=31 // pred_check_branch
              %255 = sbr.rel target = $region36
            $region35: #{downsample.1} parent=31 // pred_region
              // Predicated region
              $region55: #{downsample.1} parent=35 // pred_check
                _
              $region56: #{downsample.1} parent=35 // pred_check_branch
                %337 = sbr.rel (0) target = $region58
              $region57: #{downsample.1} parent=35 // pred_region
                %s338 = sshrl.u32 %s242, 3
                // While loop
                $region59: #{downsample.1} parent=57 // loop_pre_header
                  _
                $region60: #{downsample.1} parent=57 // loop_header
                  %s340 = sphi 0, %s342
                  %p341 = scmp.ge.s32.totalorder %s340, %s338
                  %s345 = sphi 0, %s350
                  %s346 = sphi %s250, %s353
                  %s347 = sphi %s238, %s354
                $region61: #{downsample.1} parent=57 // loop_header_branch
                  %344 = sbr.rel (%p341) target = $region65
                $region62: #{downsample.1} parent=57 // loop_body
                  %s348 = sadd.s32 1, %s345
                  %p349 = scmp.ge.s32.totalorder %s348, %s338
                  %s350 = scalar_select %p349, 0, %s348
                  %s351 = smul.u32 %s350, 128
                  %s352 = smul.u32 %s350, 64
                  %s353 = scalar_lea.vmem %s250, %s351
                  %s354 = scalar_lea.vmem %s238, %s352 [#allocation3]
                $region63: #{downsample.1} parent=57 // loop_footer
                  %s342 = sadd.s32 %s340, 1
                $region64: #{downsample.1} parent=57 // loop_footer_branch
                  %339 = sbr.rel target = $region60
                $region65: #{downsample.1} parent=57 // loop_exit
                  _
                %s355 = sshrl.u32 %s242, 3
                %s356 = sand.u32 %s242, 7
                %s357 = smul.u32 %s355, 8
                %s358 = smul.u32 16, %s357
                %s359 = scalar_lea.vmem %s250, %s358
                %s360 = smul.u32 8, %s357
                %s361 = scalar_lea.vmem %s238, %s360 [#allocation3]
                // While loop
                $region66: #{downsample.1} parent=57 // loop_pre_header
                  _
                $region67: #{downsample.1} parent=57 // loop_header
                  %s363 = sphi 0, %s365
                  %p364 = scmp.ge.s32.totalorder %s363, %s356
                  %s368 = sphi 0, %s373
                  %s369 = sphi %s359, %s376
                  %s370 = sphi %s361, %s377
                $region68: #{downsample.1} parent=57 // loop_header_branch
                  %367 = sbr.rel (%p364) target = $region72
                $region69: #{downsample.1} parent=57 // loop_body
                  %s371 = sadd.s32 1, %s368
                  %p372 = scmp.ge.s32.totalorder %s371, %s356
                  %s373 = scalar_select %p372, 0, %s371
                  %s374 = smul.u32 %s373, 16
                  %s375 = smul.u32 %s373, 8
                  %s376 = scalar_lea.vmem %s359, %s374
                  %s377 = scalar_lea.vmem %s361, %s375 [#allocation3]
                $region70: #{downsample.1} parent=57 // loop_footer
                  %s365 = sadd.s32 %s363, 1
                $region71: #{downsample.1} parent=57 // loop_footer_branch
                  %362 = sbr.rel target = $region67
                $region72: #{downsample.1} parent=57 // loop_exit
                  _
                %s379 = ssub.s32 16, 1
                %s380 = sshrl.u32 %s242, 3
                // While loop
                $region73: #{downsample.1} parent=57 // loop_pre_header
                  _
                $region74: #{downsample.1} parent=57 // loop_header
                  %s382 = sphi 0, %s384
                  %p383 = scmp.ge.s32.totalorder %s382, %s380
                  %s387 = sphi 0, %s424
                  %s388 = sphi %s250, %s427
                  %s389 = sphi %s238, %s428
                $region75: #{downsample.1} parent=57 // loop_header_branch
                  %386 = sbr.rel (%p383) target = $region79
                $region76: #{downsample.1} parent=57 // loop_body
                  %v390 = vld [vmem:[%s388] sm:%s379]
                  %391 = vst [vmem:[%s389] sm:%s379] %v390
                  %v392 = vld [vmem:[%s388 + $0x10] sm:%s379]
                  %393 = vst [vmem:[%s389 + $0x8] sm:%s379] %v392
                  %v394 = vld [vmem:[%s388 + $0x20] sm:%s379]
                  %395 = vst [vmem:[%s389 + $0x10] sm:%s379] %v394
                  %v396 = vld [vmem:[%s388 + $0x30] sm:%s379]
                  %397 = vst [vmem:[%s389 + $0x18] sm:%s379] %v396
                  %v398 = vld [vmem:[%s388 + $0x40] sm:%s379]
                  %399 = vst [vmem:[%s389 + $0x20] sm:%s379] %v398
                  %v400 = vld [vmem:[%s388 + $0x50] sm:%s379]
                  %401 = vst [vmem:[%s389 + $0x28] sm:%s379] %v400
                  %v402 = vld [vmem:[%s388 + $0x60] sm:%s379]
                  %403 = vst [vmem:[%s389 + $0x30] sm:%s379] %v402
                  %v404 = vld [vmem:[%s388 + $0x70] sm:%s379]
                  %405 = vst [vmem:[%s389 + $0x38] sm:%s379] %v404
                  %v406 = vld [vmem:[%s388 + $0x4] sm:%s379]
                  %407 = vst [vmem:[%s389 + $0x4] sm:%s379] %v406
                  %v408 = vld [vmem:[%s388 + $0x14] sm:%s379]
                  %409 = vst [vmem:[%s389 + $0xc] sm:%s379] %v408
                  %v410 = vld [vmem:[%s388 + $0x24] sm:%s379]
                  %411 = vst [vmem:[%s389 + $0x14] sm:%s379] %v410
                  %v412 = vld [vmem:[%s388 + $0x34] sm:%s379]
                  %413 = vst [vmem:[%s389 + $0x1c] sm:%s379] %v412
                  %v414 = vld [vmem:[%s388 + $0x44] sm:%s379]
                  %415 = vst [vmem:[%s389 + $0x24] sm:%s379] %v414
                  %v416 = vld [vmem:[%s388 + $0x54] sm:%s379]
                  %417 = vst [vmem:[%s389 + $0x2c] sm:%s379] %v416
                  %v418 = vld [vmem:[%s388 + $0x64] sm:%s379]
                  %419 = vst [vmem:[%s389 + $0x34] sm:%s379] %v418
                  %v420 = vld [vmem:[%s388 + $0x74] sm:%s379]
                  %421 = vst [vmem:[%s389 + $0x3c] sm:%s379] %v420
                  %s422 = sadd.s32 1, %s387
                  %p423 = scmp.ge.s32.totalorder %s422, %s380
                  %s424 = scalar_select %p423, 0, %s422
                  %s425 = smul.u32 %s424, 128
                  %s426 = smul.u32 %s424, 64
                  %s427 = scalar_lea.vmem %s250, %s425
                  %s428 = scalar_lea.vmem %s238, %s426 [#allocation3]
                $region77: #{downsample.1} parent=57 // loop_footer
                  %s384 = sadd.s32 %s382, 1
                $region78: #{downsample.1} parent=57 // loop_footer_branch
                  %381 = sbr.rel target = $region74
                $region79: #{downsample.1} parent=57 // loop_exit
                  _
                %s429 = sshrl.u32 %s242, 3
                %s430 = sand.u32 %s242, 7
                %s431 = smul.u32 %s429, 8
                %s432 = smul.u32 16, %s431
                %s433 = scalar_lea.vmem %s250, %s432
                %s434 = smul.u32 8, %s431
                %s435 = scalar_lea.vmem %s238, %s434 [#allocation3]
                // While loop
                $region80: #{downsample.1} parent=57 // loop_pre_header
                  _
                $region81: #{downsample.1} parent=57 // loop_header
                  %s437 = sphi 0, %s439
                  %p438 = scmp.ge.s32.totalorder %s437, %s430
                  %s442 = sphi 0, %s451
                  %s443 = sphi %s433, %s454
                  %s444 = sphi %s435, %s455
                $region82: #{downsample.1} parent=57 // loop_header_branch
                  %441 = sbr.rel (%p438) target = $region86
                $region83: #{downsample.1} parent=57 // loop_body
                  %v445 = vld [vmem:[%s443] sm:%s379]
                  %446 = vst [vmem:[%s444] sm:%s379] %v445
                  %v447 = vld [vmem:[%s443 + $0x4] sm:%s379]
                  %448 = vst [vmem:[%s444 + $0x4] sm:%s379] %v447
                  %s449 = sadd.s32 1, %s442
                  %p450 = scmp.ge.s32.totalorder %s449, %s430
                  %s451 = scalar_select %p450, 0, %s449
                  %s452 = smul.u32 %s451, 16
                  %s453 = smul.u32 %s451, 8
                  %s454 = scalar_lea.vmem %s433, %s452
                  %s455 = scalar_lea.vmem %s435, %s453 [#allocation3]
                $region84: #{downsample.1} parent=57 // loop_footer
                  %s439 = sadd.s32 %s437, 1
                $region85: #{downsample.1} parent=57 // loop_footer_branch
                  %436 = sbr.rel target = $region81
                $region86: #{downsample.1} parent=57 // loop_exit
                  _
              $region58: #{downsample.1} parent=35 // pred_fallthru
                _
            $region36: #{downsample.1} parent=31 // pred_fallthru
              _
            // Predicated region
            $region37: #{downsample.1} parent=31 // pred_check
              _
            $region38: #{downsample.1} parent=31 // pred_check_branch
              %257 = sbr.rel (0) target = $region40
            $region39: #{downsample.1} parent=31 // pred_region
              %s259 = ssub.s32 16, 1
              %s260 = sshrl.u32 %s242, 3
              // While loop
              $region41: #{downsample.1} parent=39 // loop_pre_header
                _
              $region42: #{downsample.1} parent=39 // loop_header
                %s262 = sphi 0, %s264
                %p263 = scmp.ge.s32.totalorder %s262, %s260
                %s267 = sphi 0, %s304
                %s268 = sphi %s250, %s307
                %s269 = sphi %s238, %s308
              $region43: #{downsample.1} parent=39 // loop_header_branch
                %266 = sbr.rel (%p263) target = $region47
              $region44: #{downsample.1} parent=39 // loop_body
                %v270 = vld [vmem:[%s268] sm:%s259]
                %271 = vst [vmem:[%s269] sm:%s259] %v270
                %v272 = vld [vmem:[%s268 + $0x10] sm:%s259]
                %273 = vst [vmem:[%s269 + $0x8] sm:%s259] %v272
                %v274 = vld [vmem:[%s268 + $0x20] sm:%s259]
                %275 = vst [vmem:[%s269 + $0x10] sm:%s259] %v274
                %v276 = vld [vmem:[%s268 + $0x30] sm:%s259]
                %277 = vst [vmem:[%s269 + $0x18] sm:%s259] %v276
                %v278 = vld [vmem:[%s268 + $0x40] sm:%s259]
                %279 = vst [vmem:[%s269 + $0x20] sm:%s259] %v278
                %v280 = vld [vmem:[%s268 + $0x50] sm:%s259]
                %281 = vst [vmem:[%s269 + $0x28] sm:%s259] %v280
                %v282 = vld [vmem:[%s268 + $0x60] sm:%s259]
                %283 = vst [vmem:[%s269 + $0x30] sm:%s259] %v282
                %v284 = vld [vmem:[%s268 + $0x70] sm:%s259]
                %285 = vst [vmem:[%s269 + $0x38] sm:%s259] %v284
                %v286 = vld [vmem:[%s268 + $0x4] sm:%s259]
                %287 = vst [vmem:[%s269 + $0x4] sm:%s259] %v286
                %v288 = vld [vmem:[%s268 + $0x14] sm:%s259]
                %289 = vst [vmem:[%s269 + $0xc] sm:%s259] %v288
                %v290 = vld [vmem:[%s268 + $0x24] sm:%s259]
                %291 = vst [vmem:[%s269 + $0x14] sm:%s259] %v290
                %v292 = vld [vmem:[%s268 + $0x34] sm:%s259]
                %293 = vst [vmem:[%s269 + $0x1c] sm:%s259] %v292
                %v294 = vld [vmem:[%s268 + $0x44] sm:%s259]
                %295 = vst [vmem:[%s269 + $0x24] sm:%s259] %v294
                %v296 = vld [vmem:[%s268 + $0x54] sm:%s259]
                %297 = vst [vmem:[%s269 + $0x2c] sm:%s259] %v296
                %v298 = vld [vmem:[%s268 + $0x64] sm:%s259]
                %299 = vst [vmem:[%s269 + $0x34] sm:%s259] %v298
                %v300 = vld [vmem:[%s268 + $0x74] sm:%s259]
                %301 = vst [vmem:[%s269 + $0x3c] sm:%s259] %v300
                %s302 = sadd.s32 1, %s267
                %p303 = scmp.ge.s32.totalorder %s302, %s260
                %s304 = scalar_select %p303, 0, %s302
                %s305 = smul.u32 %s304, 128
                %s306 = smul.u32 %s304, 64
                %s307 = scalar_lea.vmem %s250, %s305
                %s308 = scalar_lea.vmem %s238, %s306 [#allocation3]
              $region45: #{downsample.1} parent=39 // loop_footer
                %s264 = sadd.s32 %s262, 1
              $region46: #{downsample.1} parent=39 // loop_footer_branch
                %261 = sbr.rel target = $region42
              $region47: #{downsample.1} parent=39 // loop_exit
                _
              %s309 = sshrl.u32 %s242, 3
              %s310 = sand.u32 %s242, 7
              %s311 = smul.u32 %s309, 8
              %s312 = smul.u32 16, %s311
              %s313 = scalar_lea.vmem %s250, %s312
              %s314 = smul.u32 8, %s311
              %s315 = scalar_lea.vmem %s238, %s314 [#allocation3]
              // While loop
              $region48: #{downsample.1} parent=39 // loop_pre_header
                _
              $region49: #{downsample.1} parent=39 // loop_header
                %s317 = sphi 0, %s319
                %p318 = scmp.ge.s32.totalorder %s317, %s310
                %s322 = sphi 0, %s331
                %s323 = sphi %s313, %s334
                %s324 = sphi %s315, %s335
              $region50: #{downsample.1} parent=39 // loop_header_branch
                %321 = sbr.rel (%p318) target = $region54
              $region51: #{downsample.1} parent=39 // loop_body
                %v325 = vld [vmem:[%s323] sm:%s259]
                %326 = vst [vmem:[%s324] sm:%s259] %v325
                %v327 = vld [vmem:[%s323 + $0x4] sm:%s259]
                %328 = vst [vmem:[%s324 + $0x4] sm:%s259] %v327
                %s329 = sadd.s32 1, %s322
                %p330 = scmp.ge.s32.totalorder %s329, %s310
                %s331 = scalar_select %p330, 0, %s329
                %s332 = smul.u32 %s331, 16
                %s333 = smul.u32 %s331, 8
                %s334 = scalar_lea.vmem %s313, %s332
                %s335 = scalar_lea.vmem %s315, %s333 [#allocation3]
              $region52: #{downsample.1} parent=39 // loop_footer
                %s319 = sadd.s32 %s317, 1
              $region53: #{downsample.1} parent=39 // loop_footer_branch
                %316 = sbr.rel target = $region49
              $region54: #{downsample.1} parent=39 // loop_exit
                _
            $region40: #{downsample.1} parent=31 // pred_fallthru
              _
          $region32: #{downsample.1} parent=27 // pred_fallthru
            _
          %456 = vnop
        $region28: #{downsample.1} parent=23 // pred_fallthru
          _
        // Predicated region
        $region87: #{downsample.1} parent=23 // pred_check
          %p457 = pneg %p84
        $region88: #{downsample.1} parent=23 // pred_check_branch
          %459 = sbr.rel (%p457) target = $region90
        $region89: #{downsample.1} parent=23 // pred_region
          %s460 = smul.u32 %s20, 8
          %s461 = sadd.s32 %s460, 8
          %p462 = scmp.lt.s32.totalorder %s19, 1
          %s463 = scalar_select %p462, %s19, 1
          %p464 = scmp.lt.s32.totalorder %s461, 8
          %s465 = scalar_select %p464, %s461, 8
          %s466 = smul.addr %s465, 4
          %s467 = smul.addr %s463, 36
          %s468 = sadd.s32 %s466, %s467
          %s469 = smul.addr %s468, 4
          %s470 = scalar_lea.vmem %s1, %s469
          %s471 = smul.u32 %s20, 8
          %s472 = sadd.s32 %s471, 8
        $region90: #{downsample.1} parent=23 // pred_fallthru
          _
        // Predicated region
        $region91: #{downsample.1} parent=23 // pred_check
          %p473 = pneg %p112
        $region92: #{downsample.1} parent=23 // pred_check_branch
          %475 = sbr.rel (%p473) target = $region94
        $region93: #{downsample.1} parent=23 // pred_region
          %s476 = sand.u32 %s102, 1
          %s477 = sand.u32 %s102, 1
          %s478 = smul.addr %s477, 64
          %s479 = scalar_lea.vmem [#allocation4], %s478
          %s480 = smul.u32 8, %s20
          %s481 = ssub.s32 9, %s480
          %p482 = scmp.lt.s32.totalorder %s481, 8
          %s483 = scalar_select %p482, %s481, 8
          %s484 = smul.u32 4, %s483
          %s485 = smul.u32 %s484, 2
          %p486 = scmp.ne.s32.totalorder 0, %s485
          %s487 = smul.addr %s480, 4
          %s488 = sadd.s32 2, %s487
          %s489 = smul.addr %s19, 36
          %s490 = sadd.s32 %s488, %s489
          %s491 = smul.addr %s490, 4
          %s492 = scalar_lea.vmem %s2, %s491
          // Predicated region
          $region95: #{downsample.1} parent=93 // pred_check
            %p493 = pneg %p486
          $region96: #{downsample.1} parent=93 // pred_check_branch
            %495 = sbr.rel (%p493) target = $region98
          $region97: #{downsample.1} parent=93 // pred_region
            // Predicated region
            $region99: #{downsample.1} parent=97 // pred_check
              _
            $region100: #{downsample.1} parent=97 // pred_check_branch
              %497 = sbr.rel target = $region102
            $region101: #{downsample.1} parent=97 // pred_region
              // Predicated region
              $region121: #{downsample.1} parent=101 // pred_check
                _
              $region122: #{downsample.1} parent=101 // pred_check_branch
                %579 = sbr.rel (0) target = $region124
              $region123: #{downsample.1} parent=101 // pred_region
                %s580 = sshrl.u32 %s483, 3
                // While loop
                $region125: #{downsample.1} parent=123 // loop_pre_header
                  _
                $region126: #{downsample.1} parent=123 // loop_header
                  %s582 = sphi 0, %s584
                  %p583 = scmp.ge.s32.totalorder %s582, %s580
                  %s587 = sphi 0, %s592
                  %s588 = sphi %s492, %s595
                  %s589 = sphi %s479, %s596
                $region127: #{downsample.1} parent=123 // loop_header_branch
                  %586 = sbr.rel (%p583) target = $region131
                $region128: #{downsample.1} parent=123 // loop_body
                  %s590 = sadd.s32 1, %s587
                  %p591 = scmp.ge.s32.totalorder %s590, %s580
                  %s592 = scalar_select %p591, 0, %s590
                  %s593 = smul.u32 %s592, 128
                  %s594 = smul.u32 %s592, 64
                  %s595 = scalar_lea.vmem %s492, %s593
                  %s596 = scalar_lea.vmem %s479, %s594 [#allocation4]
                $region129: #{downsample.1} parent=123 // loop_footer
                  %s584 = sadd.s32 %s582, 1
                $region130: #{downsample.1} parent=123 // loop_footer_branch
                  %581 = sbr.rel target = $region126
                $region131: #{downsample.1} parent=123 // loop_exit
                  _
                %s597 = sshrl.u32 %s483, 3
                %s598 = sand.u32 %s483, 7
                %s599 = smul.u32 %s597, 8
                %s600 = smul.u32 16, %s599
                %s601 = scalar_lea.vmem %s492, %s600
                %s602 = smul.u32 8, %s599
                %s603 = scalar_lea.vmem %s479, %s602 [#allocation4]
                // While loop
                $region132: #{downsample.1} parent=123 // loop_pre_header
                  _
                $region133: #{downsample.1} parent=123 // loop_header
                  %s605 = sphi 0, %s607
                  %p606 = scmp.ge.s32.totalorder %s605, %s598
                  %s610 = sphi 0, %s615
                  %s611 = sphi %s601, %s618
                  %s612 = sphi %s603, %s619
                $region134: #{downsample.1} parent=123 // loop_header_branch
                  %609 = sbr.rel (%p606) target = $region138
                $region135: #{downsample.1} parent=123 // loop_body
                  %s613 = sadd.s32 1, %s610
                  %p614 = scmp.ge.s32.totalorder %s613, %s598
                  %s615 = scalar_select %p614, 0, %s613
                  %s616 = smul.u32 %s615, 16
                  %s617 = smul.u32 %s615, 8
                  %s618 = scalar_lea.vmem %s601, %s616
                  %s619 = scalar_lea.vmem %s603, %s617 [#allocation4]
                $region136: #{downsample.1} parent=123 // loop_footer
                  %s607 = sadd.s32 %s605, 1
                $region137: #{downsample.1} parent=123 // loop_footer_branch
                  %604 = sbr.rel target = $region133
                $region138: #{downsample.1} parent=123 // loop_exit
                  _
                %s621 = ssub.s32 16, 1
                %s622 = sshrl.u32 %s483, 3
                // While loop
                $region139: #{downsample.1} parent=123 // loop_pre_header
                  _
                $region140: #{downsample.1} parent=123 // loop_header
                  %s624 = sphi 0, %s626
                  %p625 = scmp.ge.s32.totalorder %s624, %s622
                  %s629 = sphi 0, %s666
                  %s630 = sphi %s492, %s669
                  %s631 = sphi %s479, %s670
                $region141: #{downsample.1} parent=123 // loop_header_branch
                  %628 = sbr.rel (%p625) target = $region145
                $region142: #{downsample.1} parent=123 // loop_body
                  %v632 = vld [vmem:[%s630] sm:%s621]
                  %633 = vst [vmem:[%s631] sm:%s621] %v632
                  %v634 = vld [vmem:[%s630 + $0x10] sm:%s621]
                  %635 = vst [vmem:[%s631 + $0x8] sm:%s621] %v634
                  %v636 = vld [vmem:[%s630 + $0x20] sm:%s621]
                  %637 = vst [vmem:[%s631 + $0x10] sm:%s621] %v636
                  %v638 = vld [vmem:[%s630 + $0x30] sm:%s621]
                  %639 = vst [vmem:[%s631 + $0x18] sm:%s621] %v638
                  %v640 = vld [vmem:[%s630 + $0x40] sm:%s621]
                  %641 = vst [vmem:[%s631 + $0x20] sm:%s621] %v640
                  %v642 = vld [vmem:[%s630 + $0x50] sm:%s621]
                  %643 = vst [vmem:[%s631 + $0x28] sm:%s621] %v642
                  %v644 = vld [vmem:[%s630 + $0x60] sm:%s621]
                  %645 = vst [vmem:[%s631 + $0x30] sm:%s621] %v644
                  %v646 = vld [vmem:[%s630 + $0x70] sm:%s621]
                  %647 = vst [vmem:[%s631 + $0x38] sm:%s621] %v646
                  %v648 = vld [vmem:[%s630 + $0x4] sm:%s621]
                  %649 = vst [vmem:[%s631 + $0x4] sm:%s621] %v648
                  %v650 = vld [vmem:[%s630 + $0x14] sm:%s621]
                  %651 = vst [vmem:[%s631 + $0xc] sm:%s621] %v650
                  %v652 = vld [vmem:[%s630 + $0x24] sm:%s621]
                  %653 = vst [vmem:[%s631 + $0x14] sm:%s621] %v652
                  %v654 = vld [vmem:[%s630 + $0x34] sm:%s621]
                  %655 = vst [vmem:[%s631 + $0x1c] sm:%s621] %v654
                  %v656 = vld [vmem:[%s630 + $0x44] sm:%s621]
                  %657 = vst [vmem:[%s631 + $0x24] sm:%s621] %v656
                  %v658 = vld [vmem:[%s630 + $0x54] sm:%s621]
                  %659 = vst [vmem:[%s631 + $0x2c] sm:%s621] %v658
                  %v660 = vld [vmem:[%s630 + $0x64] sm:%s621]
                  %661 = vst [vmem:[%s631 + $0x34] sm:%s621] %v660
                  %v662 = vld [vmem:[%s630 + $0x74] sm:%s621]
                  %663 = vst [vmem:[%s631 + $0x3c] sm:%s621] %v662
                  %s664 = sadd.s32 1, %s629
                  %p665 = scmp.ge.s32.totalorder %s664, %s622
                  %s666 = scalar_select %p665, 0, %s664
                  %s667 = smul.u32 %s666, 128
                  %s668 = smul.u32 %s666, 64
                  %s669 = scalar_lea.vmem %s492, %s667
                  %s670 = scalar_lea.vmem %s479, %s668 [#allocation4]
                $region143: #{downsample.1} parent=123 // loop_footer
                  %s626 = sadd.s32 %s624, 1
                $region144: #{downsample.1} parent=123 // loop_footer_branch
                  %623 = sbr.rel target = $region140
                $region145: #{downsample.1} parent=123 // loop_exit
                  _
                %s671 = sshrl.u32 %s483, 3
                %s672 = sand.u32 %s483, 7
                %s673 = smul.u32 %s671, 8
                %s674 = smul.u32 16, %s673
                %s675 = scalar_lea.vmem %s492, %s674
                %s676 = smul.u32 8, %s673
                %s677 = scalar_lea.vmem %s479, %s676 [#allocation4]
                // While loop
                $region146: #{downsample.1} parent=123 // loop_pre_header
                  _
                $region147: #{downsample.1} parent=123 // loop_header
                  %s679 = sphi 0, %s681
                  %p680 = scmp.ge.s32.totalorder %s679, %s672
                  %s684 = sphi 0, %s693
                  %s685 = sphi %s675, %s696
                  %s686 = sphi %s677, %s697
                $region148: #{downsample.1} parent=123 // loop_header_branch
                  %683 = sbr.rel (%p680) target = $region152
                $region149: #{downsample.1} parent=123 // loop_body
                  %v687 = vld [vmem:[%s685] sm:%s621]
                  %688 = vst [vmem:[%s686] sm:%s621] %v687
                  %v689 = vld [vmem:[%s685 + $0x4] sm:%s621]
                  %690 = vst [vmem:[%s686 + $0x4] sm:%s621] %v689
                  %s691 = sadd.s32 1, %s684
                  %p692 = scmp.ge.s32.totalorder %s691, %s672
                  %s693 = scalar_select %p692, 0, %s691
                  %s694 = smul.u32 %s693, 16
                  %s695 = smul.u32 %s693, 8
                  %s696 = scalar_lea.vmem %s675, %s694
                  %s697 = scalar_lea.vmem %s677, %s695 [#allocation4]
                $region150: #{downsample.1} parent=123 // loop_footer
                  %s681 = sadd.s32 %s679, 1
                $region151: #{downsample.1} parent=123 // loop_footer_branch
                  %678 = sbr.rel target = $region147
                $region152: #{downsample.1} parent=123 // loop_exit
                  _
              $region124: #{downsample.1} parent=101 // pred_fallthru
                _
            $region102: #{downsample.1} parent=97 // pred_fallthru
              _
            // Predicated region
            $region103: #{downsample.1} parent=97 // pred_check
              _
            $region104: #{downsample.1} parent=97 // pred_check_branch
              %499 = sbr.rel (0) target = $region106
            $region105: #{downsample.1} parent=97 // pred_region
              %s501 = ssub.s32 16, 1
              %s502 = sshrl.u32 %s483, 3
              // While loop
              $region107: #{downsample.1} parent=105 // loop_pre_header
                _
              $region108: #{downsample.1} parent=105 // loop_header
                %s504 = sphi 0, %s506
                %p505 = scmp.ge.s32.totalorder %s504, %s502
                %s509 = sphi 0, %s546
                %s510 = sphi %s492, %s549
                %s511 = sphi %s479, %s550
              $region109: #{downsample.1} parent=105 // loop_header_branch
                %508 = sbr.rel (%p505) target = $region113
              $region110: #{downsample.1} parent=105 // loop_body
                %v512 = vld [vmem:[%s510] sm:%s501]
                %513 = vst [vmem:[%s511] sm:%s501] %v512
                %v514 = vld [vmem:[%s510 + $0x10] sm:%s501]
                %515 = vst [vmem:[%s511 + $0x8] sm:%s501] %v514
                %v516 = vld [vmem:[%s510 + $0x20] sm:%s501]
                %517 = vst [vmem:[%s511 + $0x10] sm:%s501] %v516
                %v518 = vld [vmem:[%s510 + $0x30] sm:%s501]
                %519 = vst [vmem:[%s511 + $0x18] sm:%s501] %v518
                %v520 = vld [vmem:[%s510 + $0x40] sm:%s501]
                %521 = vst [vmem:[%s511 + $0x20] sm:%s501] %v520
                %v522 = vld [vmem:[%s510 + $0x50] sm:%s501]
                %523 = vst [vmem:[%s511 + $0x28] sm:%s501] %v522
                %v524 = vld [vmem:[%s510 + $0x60] sm:%s501]
                %525 = vst [vmem:[%s511 + $0x30] sm:%s501] %v524
                %v526 = vld [vmem:[%s510 + $0x70] sm:%s501]
                %527 = vst [vmem:[%s511 + $0x38] sm:%s501] %v526
                %v528 = vld [vmem:[%s510 + $0x4] sm:%s501]
                %529 = vst [vmem:[%s511 + $0x4] sm:%s501] %v528
                %v530 = vld [vmem:[%s510 + $0x14] sm:%s501]
                %531 = vst [vmem:[%s511 + $0xc] sm:%s501] %v530
                %v532 = vld [vmem:[%s510 + $0x24] sm:%s501]
                %533 = vst [vmem:[%s511 + $0x14] sm:%s501] %v532
                %v534 = vld [vmem:[%s510 + $0x34] sm:%s501]
                %535 = vst [vmem:[%s511 + $0x1c] sm:%s501] %v534
                %v536 = vld [vmem:[%s510 + $0x44] sm:%s501]
                %537 = vst [vmem:[%s511 + $0x24] sm:%s501] %v536
                %v538 = vld [vmem:[%s510 + $0x54] sm:%s501]
                %539 = vst [vmem:[%s511 + $0x2c] sm:%s501] %v538
                %v540 = vld [vmem:[%s510 + $0x64] sm:%s501]
                %541 = vst [vmem:[%s511 + $0x34] sm:%s501] %v540
                %v542 = vld [vmem:[%s510 + $0x74] sm:%s501]
                %543 = vst [vmem:[%s511 + $0x3c] sm:%s501] %v542
                %s544 = sadd.s32 1, %s509
                %p545 = scmp.ge.s32.totalorder %s544, %s502
                %s546 = scalar_select %p545, 0, %s544
                %s547 = smul.u32 %s546, 128
                %s548 = smul.u32 %s546, 64
                %s549 = scalar_lea.vmem %s492, %s547
                %s550 = scalar_lea.vmem %s479, %s548 [#allocation4]
              $region111: #{downsample.1} parent=105 // loop_footer
                %s506 = sadd.s32 %s504, 1
              $region112: #{downsample.1} parent=105 // loop_footer_branch
                %503 = sbr.rel target = $region108
              $region113: #{downsample.1} parent=105 // loop_exit
                _
              %s551 = sshrl.u32 %s483, 3
              %s552 = sand.u32 %s483, 7
              %s553 = smul.u32 %s551, 8
              %s554 = smul.u32 16, %s553
              %s555 = scalar_lea.vmem %s492, %s554
              %s556 = smul.u32 8, %s553
              %s557 = scalar_lea.vmem %s479, %s556 [#allocation4]
              // While loop
              $region114: #{downsample.1} parent=105 // loop_pre_header
                _
              $region115: #{downsample.1} parent=105 // loop_header
                %s559 = sphi 0, %s561
                %p560 = scmp.ge.s32.totalorder %s559, %s552
                %s564 = sphi 0, %s573
                %s565 = sphi %s555, %s576
                %s566 = sphi %s557, %s577
              $region116: #{downsample.1} parent=105 // loop_header_branch
                %563 = sbr.rel (%p560) target = $region120
              $region117: #{downsample.1} parent=105 // loop_body
                %v567 = vld [vmem:[%s565] sm:%s501]
                %568 = vst [vmem:[%s566] sm:%s501] %v567
                %v569 = vld [vmem:[%s565 + $0x4] sm:%s501]
                %570 = vst [vmem:[%s566 + $0x4] sm:%s501] %v569
                %s571 = sadd.s32 1, %s564
                %p572 = scmp.ge.s32.totalorder %s571, %s552
                %s573 = scalar_select %p572, 0, %s571
                %s574 = smul.u32 %s573, 16
                %s575 = smul.u32 %s573, 8
                %s576 = scalar_lea.vmem %s555, %s574
                %s577 = scalar_lea.vmem %s557, %s575 [#allocation4]
              $region118: #{downsample.1} parent=105 // loop_footer
                %s561 = sadd.s32 %s559, 1
              $region119: #{downsample.1} parent=105 // loop_footer_branch
                %558 = sbr.rel target = $region115
              $region120: #{downsample.1} parent=105 // loop_exit
                _
            $region106: #{downsample.1} parent=97 // pred_fallthru
              _
          $region98: #{downsample.1} parent=93 // pred_fallthru
            _
          %698 = vnop
        $region94: #{downsample.1} parent=23 // pred_fallthru
          _
      $region24: #{downsample.1} parent=5 // pred_fallthru
        _
      %p699 = scmp.le.s32.totalorder 1, %s11
      %p700 = scmp.lt.s32.totalorder %s11, 3
      %p701 = pnand %p699, %p700
      %p702 = pneg %p701
      // Predicated region
      $region153: #{downsample.1} parent=5 // pred_check
        _
      $region154: #{downsample.1} parent=5 // pred_check_branch
        %704 = sbr.rel (%p701) target = $region156
      $region155: #{downsample.1} parent=5 // pred_region
        %s705 = ssub.s32 %s11, 1
        %s706 = sand.u32 %s45, 1
        %s707 = sand.u32 %s45, 1
        %s708 = smul.addr %s707, 64
        %s709 = scalar_lea.vmem [#allocation3], %s708
        // Predicated region
        $region157: #{downsample.1} parent=155 // pred_check
          %p710 = pneg %p58
        $region158: #{downsample.1} parent=155 // pred_check_branch
          %712 = sbr.rel (%p710) target = $region160
        $region159: #{downsample.1} parent=155 // pred_region
          _
        $region160: #{downsample.1} parent=155 // pred_fallthru
          _
        %s713 = sand.u32 %s105, 1
        %s714 = sand.u32 %s105, 1
        %s715 = smul.addr %s714, 64
        %s716 = scalar_lea.vmem [#allocation4], %s715
        // Predicated region
        $region161: #{downsample.1} parent=155 // pred_check
          %p717 = pneg %p118
        $region162: #{downsample.1} parent=155 // pred_check_branch
          %719 = sbr.rel (%p717) target = $region164
        $region163: #{downsample.1} parent=155 // pred_region
          _
        $region164: #{downsample.1} parent=155 // pred_fallthru
          _
        %s720 = sand.u32 %s45, 1
        %s721 = sand.u32 %s45, 1
        %s722 = smul.addr %s721, 64
        %s723 = scalar_lea.vmem [#allocation3], %s722
        %p724 = pneg %p58
        %p725 = pneg %p55
        %s726 = smul.u32 %s23, 8
        %s727 = sadd.s32 %s726, 8
        %p728 = scmp.lt.s32.totalorder %s22, 1
        %s729 = scalar_select %p728, %s22, 1
        %p730 = scmp.lt.s32.totalorder %s727, 8
        %s731 = scalar_select %p730, %s727, 8
        %s732 = smul.addr %s731, 4
        %s733 = smul.addr %s729, 36
        %s734 = sadd.s32 %s732, %s733
        %s735 = smul.addr %s734, 4
        %s736 = scalar_lea.vmem %s1, %s735
        %p737 = pneg %p90
        %p738 = pneg %p87
        %s739 = sand.u32 %s105, 1
        %s740 = sand.u32 %s105, 1
        %s741 = smul.addr %s740, 64
        %s742 = scalar_lea.vmem [#allocation4], %s741
        %p743 = pneg %p118
        %p744 = pneg %p115
        %p745 = scmp.lt.s32.totalorder %s21, 0
        %s746 = scalar_select %p745, %s21, 0
        %s747 = smul.addr %s746, 4
        %s748 = scalar_lea.vmem %s3, %s747
        %p749 = pneg %p144
        %p750 = pneg %p141
        %p751 = scmp.lt.s32.totalorder %s21, 0
        %s752 = scalar_select %p751, %s21, 0
        %s753 = scalar_lea.vmem %s4, %s752
        %p754 = pneg %p170
        %p755 = pneg %p167
        %p756 = pneg %p200
        %p757 = pneg %p197
        %s758 = smul.u32 16, %s23
        %p759 = scmp.lt.s32.totalorder %s22, 1
        %s760 = scalar_select %p759, %s22, 1
        %p761 = scmp.lt.s32.totalorder %s758, 15
        %s762 = scalar_select %p761, %s758, 15
        %p763 = scmp.lt.s32.totalorder %s21, 0
        %s764 = scalar_select %p763, %s21, 0
        %s765 = sadd.s32 %s764, %s762
        %s766 = smul.addr %s760, 16
        %s767 = sadd.s32 %s765, %s766
        %s768 = smul.addr %s767, 8
        %s769 = scalar_lea.vmem %s5, %s768
        %s770 = smul.u32 8, %s23
        %s771 = ssub.s32 9, %s770
        %p772 = scmp.lt.s32.totalorder %s771, 8
        %s773 = scalar_select %p772, %s771, 8
        %s774 = smul.u32 4, %s773
        %s775 = smul.u32 %s774, 2
        %s776 = smul.u32 %s23, 8
        %s777 = sadd.s32 %s776, 8
        %p778 = scmp.lt.s32.totalorder %s22, 1
        %s779 = scalar_select %p778, %s22, 1
        %p780 = scmp.lt.s32.totalorder %s777, 8
        %s781 = scalar_select %p780, %s777, 8
        %s782 = smul.addr %s781, 4
        %s783 = smul.addr %s779, 36
        %s784 = sadd.s32 %s782, %s783
        %s785 = smul.addr %s784, 4
        %s786 = scalar_lea.vmem %s1, %s785
        %s787 = smul.u32 %s23, 8
        %s788 = sadd.s32 %s787, 8
        %s789 = smul.u32 8, %s23
        %s790 = ssub.s32 9, %s789
        %p791 = scmp.lt.s32.totalorder %s790, 8
        %s792 = scalar_select %p791, %s790, 8
        %s793 = smul.u32 4, %s792
        %s794 = smul.u32 %s793, 2
        %p795 = scmp.lt.s32.totalorder %s21, 0
        %s796 = scalar_select %p795, %s21, 0
        %s797 = smul.addr %s796, 4
        %s798 = scalar_lea.vmem %s3, %s797
        %p799 = scmp.lt.s32.totalorder %s21, 0
        %s800 = scalar_select %p799, %s21, 0
        %s801 = scalar_lea.vmem %s4, %s800
        %s802 = smul.u32 16, %s23
        %p803 = scmp.lt.s32.totalorder %s22, 1
        %s804 = scalar_select %p803, %s22, 1
        %p805 = scmp.lt.s32.totalorder %s802, 15
        %s806 = scalar_select %p805, %s802, 15
        %p807 = scmp.lt.s32.totalorder %s21, 0
        %s808 = scalar_select %p807, %s21, 0
        %s809 = sadd.s32 %s808, %s806
        %s810 = smul.addr %s804, 16
        %s811 = sadd.s32 %s809, %s810
        %s812 = smul.addr %s811, 8
        %s813 = scalar_lea.vmem %s5, %s812
        %s814 = smul.u32 16, %s23
        %v816 = vld [vmem:[%s709] sm:$0xf]
        %v817 = vld [vmem:[%s709 + $0x4] sm:$0xf]
        %v818 = vld [vmem:[%s709 + $0x8] sm:$0xf]
        %v819 = vld [vmem:[%s709 + $0xc] sm:$0xf]
        %v820 = vld [vmem:[%s709 + $0x10] sm:$0xf]
        %v821 = vld [vmem:[%s709 + $0x14] sm:$0xf]
        %v822 = vld [vmem:[%s709 + $0x18] sm:$0xf]
        %v823 = vld [vmem:[%s709 + $0x1c] sm:$0xf]
        %v824 = vld [vmem:[%s709 + $0x20] sm:$0xf]
        %v825 = vld [vmem:[%s709 + $0x24] sm:$0xf]
        %v826 = vld [vmem:[%s709 + $0x28] sm:$0xf]
        %v827 = vld [vmem:[%s709 + $0x2c] sm:$0xf]
        %v828 = vld [vmem:[%s709 + $0x30] sm:$0xf]
        %v829 = vld [vmem:[%s709 + $0x34] sm:$0xf]
        %v830 = vld [vmem:[%s709 + $0x38] sm:$0xf]
        %v831 = vld [vmem:[%s709 + $0x3c] sm:$0xf]
        %v832 = vld [vmem:[%s716] sm:$0xf]
        %v833 = vld [vmem:[%s716 + $0x4] sm:$0xf]
        %v834 = vld [vmem:[%s716 + $0x8] sm:$0xf]
        %v835 = vld [vmem:[%s716 + $0xc] sm:$0xf]
        %v836 = vld [vmem:[%s716 + $0x10] sm:$0xf]
        %v837 = vld [vmem:[%s716 + $0x14] sm:$0xf]
        %v838 = vld [vmem:[%s716 + $0x18] sm:$0xf]
        %v839 = vld [vmem:[%s716 + $0x1c] sm:$0xf]
        %v840 = vld [vmem:[%s716 + $0x20] sm:$0xf]
        %v841 = vld [vmem:[%s716 + $0x24] sm:$0xf]
        %v842 = vld [vmem:[%s716 + $0x28] sm:$0xf]
        %v843 = vld [vmem:[%s716 + $0x2c] sm:$0xf]
        %v844 = vld [vmem:[%s716 + $0x30] sm:$0xf]
        %v845 = vld [vmem:[%s716 + $0x34] sm:$0xf]
        %v846 = vld [vmem:[%s716 + $0x38] sm:$0xf]
        %v847 = vld [vmem:[%s716 + $0x3c] sm:$0xf]
        %v848 = vld [vmem:[%s786] sm:$0xf]
        %v849 = vld [vmem:[%s786 + $0x4] sm:$0xf]
        %v850 = vld [vmem:[%s798] sm:$0xf]
        %v851 = vld [vmem:[%s798 + $0x4] sm:$0x3]
        %v852 = vld [vmem:[%s801] sm:$0x1]
        %v854 = vperm.slane %v852, 0
        %v872 = vunpack.c.l.b16 %v816
        %v873 = vunpack.c.l.b16 %v817
        %v874 = vunpack.c.l.b16 %v818
        %v875 = vunpack.c.l.b16 %v819
        %v876 = vunpack.c.l.b16 %v820
        %v877 = vunpack.c.l.b16 %v821
        %v878 = vunpack.c.l.b16 %v822
        %v879 = vunpack.c.l.b16 %v823
        %v880 = vunpack.c.l.b16 %v824
        %v881 = vunpack.c.l.b16 %v825
        %v882 = vunpack.c.l.b16 %v826
        %v883 = vunpack.c.l.b16 %v827
        %v884 = vunpack.c.l.b16 %v828
        %v885 = vunpack.c.l.b16 %v829
        %v886 = vunpack.c.l.b16 %v830
        %v887 = vunpack.c.l.b16 %v831
        %v888 = vpack.c.b16 %v873, %v872
        %v889 = vpack.c.b16 %v875, %v874
        %v890 = vpack.c.b16 %v877, %v876
        %v891 = vpack.c.b16 %v879, %v878
        %v892 = vpack.c.b16 %v881, %v880
        %v893 = vpack.c.b16 %v883, %v882
        %v894 = vpack.c.b16 %v885, %v884
        %v895 = vpack.c.b16 %v887, %v886
        %v898 = vunpack.c.l.b16 %v850
        %v899 = vunpack.c.l.b16 %v851
        %v900 = vpack.c.b16 %v899, %v898
        %vm901 = vcmask 97280
        %v903 = vsel %vm901, %v888, 0
        %v906 = vsel %vm901, %v889, 0
        %v909 = vsel %vm901, %v890, 0
        %v912 = vsel %vm901, %v891, 0
        %v915 = vsel %vm901, %v892, 0
        %v918 = vsel %vm901, %v893, 0
        %v921 = vsel %vm901, %v894, 0
        %v924 = vsel %vm901, %v895, 0
        %vm926 = vcmask 1045504
        %v928 = vsel %vm926, %v900, 0
        %930 = vmatpush.bf16.msra.mxu0 0
        %931 = vmatpush.bf16.msra.mxu0 0
        %932 = vmatpush.bf16.msra.mxu0 0
        %933 = vmatpush.bf16.msra.mxu0 0
        %934 = vmatpush.bf16.msra.mxu0 0
        %935 = vmatpush.bf16.msra.mxu0 0
        %936 = vmatpush.bf16.msra.mxu0 0
        %937 = vmatpush.bf16.msra.mxu0 %v928
        %938 = vmatmul.bf16.gmra.mxu0 %v903
        %v939 = vpop.f32.mrf.mxu0
        %v940 = vadd.f32 %v854, %v939
        %v941 = vpop.f32.mrf.mxu0
        %v942 = vadd.f32 %v854, %v941
        %943 = vmatmul.bf16.gmra.mxu0 %v906
        %v944 = vpop.f32.mrf.mxu0
        %v945 = vadd.f32 %v854, %v944
        %v946 = vpop.f32.mrf.mxu0
        %v947 = vadd.f32 %v854, %v946
        %948 = vmatmul.bf16.gmra.mxu0 %v909
        %v949 = vpop.f32.mrf.mxu0
        %v950 = vadd.f32 %v854, %v949
        %v951 = vpop.f32.mrf.mxu0
        %v952 = vadd.f32 %v854, %v951
        %953 = vmatmul.bf16.gmra.mxu0 %v912
        %v954 = vpop.f32.mrf.mxu0
        %v955 = vadd.f32 %v854, %v954
        %v956 = vpop.f32.mrf.mxu0
        %v957 = vadd.f32 %v854, %v956
        %958 = vmatmul.bf16.gmra.mxu0 %v915
        %v959 = vpop.f32.mrf.mxu0
        %v960 = vadd.f32 %v854, %v959
        %v961 = vpop.f32.mrf.mxu0
        %v962 = vadd.f32 %v854, %v961
        %963 = vmatmul.bf16.gmra.mxu0 %v918
        %v964 = vpop.f32.mrf.mxu0
        %v965 = vadd.f32 %v854, %v964
        %v966 = vpop.f32.mrf.mxu0
        %v967 = vadd.f32 %v854, %v966
        %968 = vmatmul.bf16.gmra.mxu0 %v921
        %v969 = vpop.f32.mrf.mxu0
        %v970 = vadd.f32 %v854, %v969
        %v971 = vpop.f32.mrf.mxu0
        %v972 = vadd.f32 %v854, %v971
        %973 = vmatmul.bf16.gmra.mxu0 %v924
        %v974 = vpop.f32.mrf.mxu0
        %v975 = vadd.f32 %v854, %v974
        %v976 = vpop.f32.mrf.mxu0
        %v977 = vadd.f32 %v854, %v976
        %978 = vdwg.mxu0
        %979 = vst [vmem:[#allocation2] sm:$0xff] %v940
        %980 = vst [vmem:[#allocation2 + $0x8] sm:$0xff] %v942
        %981 = vst [vmem:[#allocation2 + $0x10] sm:$0xff] %v945
        %982 = vst [vmem:[#allocation2 + $0x18] sm:$0xff] %v947
        %983 = vst [vmem:[#allocation2 + $0x20] sm:$0xff] %v950
        %984 = vst [vmem:[#allocation2 + $0x28] sm:$0xff] %v952
        %985 = vst [vmem:[#allocation2 + $0x30] sm:$0xff] %v955
        %986 = vst [vmem:[#allocation2 + $0x38] sm:$0xff] %v957
        %987 = vst [vmem:[#allocation2 + $0x40] sm:$0xff] %v960
        %988 = vst [vmem:[#allocation2 + $0x48] sm:$0xff] %v962
        %989 = vst [vmem:[#allocation2 + $0x50] sm:$0xff] %v965
        %990 = vst [vmem:[#allocation2 + $0x58] sm:$0xff] %v967
        %991 = vst [vmem:[#allocation2 + $0x60] sm:$0xff] %v970
        %992 = vst [vmem:[#allocation2 + $0x68] sm:$0xff] %v972
        %993 = vst [vmem:[#allocation2 + $0x70] sm:$0xff] %v975
        %994 = vst [vmem:[#allocation2 + $0x78] sm:$0xff] %v977
        %v995 = vld [vmem:[#allocation2] sm:$0xff]
        %v996 = vld [vmem:[#allocation2 + $0x8] sm:$0xff]
        %v997 = vld [vmem:[#allocation2 + $0x10] sm:$0xff]
        %v998 = vld [vmem:[#allocation2 + $0x18] sm:$0xff]
        %v999 = vld [vmem:[#allocation2 + $0x20] sm:$0xff]
        %v1000 = vld [vmem:[#allocation2 + $0x28] sm:$0xff]
        %v1001 = vld [vmem:[#allocation2 + $0x30] sm:$0xff]
        %v1002 = vld [vmem:[#allocation2 + $0x38] sm:$0xff]
        %v1003 = vld [vmem:[#allocation2 + $0x40] sm:$0xff]
        %v1004 = vld [vmem:[#allocation2 + $0x48] sm:$0xff]
        %v1005 = vld [vmem:[#allocation2 + $0x50] sm:$0xff]
        %v1006 = vld [vmem:[#allocation2 + $0x58] sm:$0xff]
        %v1007 = vld [vmem:[#allocation2 + $0x60] sm:$0xff]
        %v1008 = vld [vmem:[#allocation2 + $0x68] sm:$0xff]
        %v1009 = vld [vmem:[#allocation2 + $0x70] sm:$0xff]
        %v1010 = vld [vmem:[#allocation2 + $0x78] sm:$0xff]
        %s1011 = scalar_lea.vmem %s798, 8
        %v1012 = vld [vmem:[%s1011] sm:$0xf]
        %v1013 = vld [vmem:[%s1011 + $0x4] sm:$0x3]
        %v1030 = vunpack.c.l.b16 %v832
        %v1031 = vunpack.c.l.b16 %v833
        %v1032 = vunpack.c.l.b16 %v834
        %v1033 = vunpack.c.l.b16 %v835
        %v1034 = vunpack.c.l.b16 %v836
        %v1035 = vunpack.c.l.b16 %v837
        %v1036 = vunpack.c.l.b16 %v838
        %v1037 = vunpack.c.l.b16 %v839
        %v1038 = vunpack.c.l.b16 %v840
        %v1039 = vunpack.c.l.b16 %v841
        %v1040 = vunpack.c.l.b16 %v842
        %v1041 = vunpack.c.l.b16 %v843
        %v1042 = vunpack.c.l.b16 %v844
        %v1043 = vunpack.c.l.b16 %v845
        %v1044 = vunpack.c.l.b16 %v846
        %v1045 = vunpack.c.l.b16 %v847
        %v1046 = vpack.c.b16 %v1031, %v1030
        %v1047 = vpack.c.b16 %v1033, %v1032
        %v1048 = vpack.c.b16 %v1035, %v1034
        %v1049 = vpack.c.b16 %v1037, %v1036
        %v1050 = vpack.c.b16 %v1039, %v1038
        %v1051 = vpack.c.b16 %v1041, %v1040
        %v1052 = vpack.c.b16 %v1043, %v1042
        %v1053 = vpack.c.b16 %v1045, %v1044
        %v1056 = vunpack.c.l.b16 %v1012
        %v1057 = vunpack.c.l.b16 %v1013
        %v1058 = vpack.c.b16 %v1057, %v1056
        %v1060 = vsel %vm901, %v1046, 0
        %v1063 = vsel %vm901, %v1047, 0
        %v1066 = vsel %vm901, %v1048, 0
        %v1069 = vsel %vm901, %v1049, 0
        %v1072 = vsel %vm901, %v1050, 0
        %v1075 = vsel %vm901, %v1051, 0
        %v1078 = vsel %vm901, %v1052, 0
        %v1081 = vsel %vm901, %v1053, 0
        %v1084 = vsel %vm926, %v1058, 0
        %1086 = vmatpush.bf16.msra.mxu0 0
        %1087 = vmatpush.bf16.msra.mxu0 0
        %1088 = vmatpush.bf16.msra.mxu0 0
        %1089 = vmatpush.bf16.msra.mxu0 0
        %1090 = vmatpush.bf16.msra.mxu0 0
        %1091 = vmatpush.bf16.msra.mxu0 0
        %1092 = vmatpush.bf16.msra.mxu0 0
        %1093 = vmatpush.bf16.msra.mxu0 %v1084
        %1094 = vmatmul.bf16.gmra.mxu0 %v1060
        %v1095 = vpop.f32.mrf.mxu0
        %v1096 = vadd.f32 0.0, %v1095
        %v1097 = vpop.f32.mrf.mxu0
        %v1098 = vadd.f32 0.0, %v1097
        %1099 = vmatmul.bf16.gmra.mxu0 %v1063
        %v1100 = vpop.f32.mrf.mxu0
        %v1101 = vadd.f32 0.0, %v1100
        %v1102 = vpop.f32.mrf.mxu0
        %v1103 = vadd.f32 0.0, %v1102
        %1104 = vmatmul.bf16.gmra.mxu0 %v1066
        %v1105 = vpop.f32.mrf.mxu0
        %v1106 = vadd.f32 0.0, %v1105
        %v1107 = vpop.f32.mrf.mxu0
        %v1108 = vadd.f32 0.0, %v1107
        %1109 = vmatmul.bf16.gmra.mxu0 %v1069
        %v1110 = vpop.f32.mrf.mxu0
        %v1111 = vadd.f32 0.0, %v1110
        %v1112 = vpop.f32.mrf.mxu0
        %v1113 = vadd.f32 0.0, %v1112
        %1114 = vmatmul.bf16.gmra.mxu0 %v1072
        %v1115 = vpop.f32.mrf.mxu0
        %v1116 = vadd.f32 0.0, %v1115
        %v1117 = vpop.f32.mrf.mxu0
        %v1118 = vadd.f32 0.0, %v1117
        %1119 = vmatmul.bf16.gmra.mxu0 %v1075
        %v1120 = vpop.f32.mrf.mxu0
        %v1121 = vadd.f32 0.0, %v1120
        %v1122 = vpop.f32.mrf.mxu0
        %v1123 = vadd.f32 0.0, %v1122
        %1124 = vmatmul.bf16.gmra.mxu0 %v1078
        %v1125 = vpop.f32.mrf.mxu0
        %v1126 = vadd.f32 0.0, %v1125
        %v1127 = vpop.f32.mrf.mxu0
        %v1128 = vadd.f32 0.0, %v1127
        %1129 = vmatmul.bf16.gmra.mxu0 %v1081
        %v1130 = vpop.f32.mrf.mxu0
        %v1131 = vadd.f32 0.0, %v1130
        %v1132 = vpop.f32.mrf.mxu0
        %v1133 = vadd.f32 0.0, %v1132
        %1134 = vdwg.mxu0
        %v1135 = vadd.f32 %v995, %v1096
        %v1136 = vadd.f32 %v996, %v1098
        %v1137 = vadd.f32 %v997, %v1101
        %v1138 = vadd.f32 %v998, %v1103
        %v1139 = vadd.f32 %v999, %v1106
        %v1140 = vadd.f32 %v1000, %v1108
        %v1141 = vadd.f32 %v1001, %v1111
        %v1142 = vadd.f32 %v1002, %v1113
        %v1143 = vadd.f32 %v1003, %v1116
        %v1144 = vadd.f32 %v1004, %v1118
        %v1145 = vadd.f32 %v1005, %v1121
        %v1146 = vadd.f32 %v1006, %v1123
        %v1147 = vadd.f32 %v1007, %v1126
        %v1148 = vadd.f32 %v1008, %v1128
        %v1149 = vadd.f32 %v1009, %v1131
        %v1150 = vadd.f32 %v1010, %v1133
        %1151 = vst [vmem:[#allocation2] sm:$0xff] %v1135
        %1152 = vst [vmem:[#allocation2 + $0x8] sm:$0xff] %v1136
        %1153 = vst [vmem:[#allocation2 + $0x10] sm:$0xff] %v1137
        %1154 = vst [vmem:[#allocation2 + $0x18] sm:$0xff] %v1138
        %1155 = vst [vmem:[#allocation2 + $0x20] sm:$0xff] %v1139
        %1156 = vst [vmem:[#allocation2 + $0x28] sm:$0xff] %v1140
        %1157 = vst [vmem:[#allocation2 + $0x30] sm:$0xff] %v1141
        %1158 = vst [vmem:[#allocation2 + $0x38] sm:$0xff] %v1142
        %1159 = vst [vmem:[#allocation2 + $0x40] sm:$0xff] %v1143
        %1160 = vst [vmem:[#allocation2 + $0x48] sm:$0xff] %v1144
        %1161 = vst [vmem:[#allocation2 + $0x50] sm:$0xff] %v1145
        %1162 = vst [vmem:[#allocation2 + $0x58] sm:$0xff] %v1146
        %1163 = vst [vmem:[#allocation2 + $0x60] sm:$0xff] %v1147
        %1164 = vst [vmem:[#allocation2 + $0x68] sm:$0xff] %v1148
        %1165 = vst [vmem:[#allocation2 + $0x70] sm:$0xff] %v1149
        %1166 = vst [vmem:[#allocation2 + $0x78] sm:$0xff] %v1150
        %v1167 = vld [vmem:[#allocation2] sm:$0xff]
        %v1168 = vld [vmem:[#allocation2 + $0x8] sm:$0xff]
        %v1169 = vld [vmem:[#allocation2 + $0x10] sm:$0xff]
        %v1170 = vld [vmem:[#allocation2 + $0x18] sm:$0xff]
        %v1171 = vld [vmem:[#allocation2 + $0x20] sm:$0xff]
        %v1172 = vld [vmem:[#allocation2 + $0x28] sm:$0xff]
        %v1173 = vld [vmem:[#allocation2 + $0x30] sm:$0xff]
        %v1174 = vld [vmem:[#allocation2 + $0x38] sm:$0xff]
        %v1175 = vld [vmem:[#allocation2 + $0x40] sm:$0xff]
        %v1176 = vld [vmem:[#allocation2 + $0x48] sm:$0xff]
        %v1177 = vld [vmem:[#allocation2 + $0x50] sm:$0xff]
        %v1178 = vld [vmem:[#allocation2 + $0x58] sm:$0xff]
        %v1179 = vld [vmem:[#allocation2 + $0x60] sm:$0xff]
        %v1180 = vld [vmem:[#allocation2 + $0x68] sm:$0xff]
        %s1181 = scalar_lea.vmem %s798, 16
        %v1182 = vld [vmem:[%s1181] sm:$0xf]
        %v1183 = vld [vmem:[%s1181 + $0x4] sm:$0x3]
        %v1186 = vunpack.c.l.b16 %v1182
        %v1187 = vunpack.c.l.b16 %v1183
        %v1188 = vpack.c.b16 %v1187, %v1186
        %v1190 = vsel %vm926, %v1188, 0
        %1192 = vmatpush.bf16.msra.mxu0 0
        %1193 = vmatpush.bf16.msra.mxu0 0
        %1194 = vmatpush.bf16.msra.mxu0 0
        %1195 = vmatpush.bf16.msra.mxu0 0
        %1196 = vmatpush.bf16.msra.mxu0 0
        %1197 = vmatpush.bf16.msra.mxu0 0
        %1198 = vmatpush.bf16.msra.mxu0 0
        %1199 = vmatpush.bf16.msra.mxu0 %v1190
        %1200 = vmatmul.bf16.gmra.mxu0 %v906
        %v1201 = vpop.f32.mrf.mxu0
        %v1202 = vadd.f32 0.0, %v1201
        %v1203 = vpop.f32.mrf.mxu0
        %v1204 = vadd.f32 0.0, %v1203
        %1205 = vmatmul.bf16.gmra.mxu0 %v909
        %v1206 = vpop.f32.mrf.mxu0
        %v1207 = vadd.f32 0.0, %v1206
        %v1208 = vpop.f32.mrf.mxu0
        %v1209 = vadd.f32 0.0, %v1208
        %1210 = vmatmul.bf16.gmra.mxu0 %v912
        %v1211 = vpop.f32.mrf.mxu0
        %v1212 = vadd.f32 0.0, %v1211
        %v1213 = vpop.f32.mrf.mxu0
        %v1214 = vadd.f32 0.0, %v1213
        %1215 = vmatmul.bf16.gmra.mxu0 %v915
        %v1216 = vpop.f32.mrf.mxu0
        %v1217 = vadd.f32 0.0, %v1216
        %v1218 = vpop.f32.mrf.mxu0
        %v1219 = vadd.f32 0.0, %v1218
        %1220 = vmatmul.bf16.gmra.mxu0 %v918
        %v1221 = vpop.f32.mrf.mxu0
        %v1222 = vadd.f32 0.0, %v1221
        %v1223 = vpop.f32.mrf.mxu0
        %v1224 = vadd.f32 0.0, %v1223
        %1225 = vmatmul.bf16.gmra.mxu0 %v921
        %v1226 = vpop.f32.mrf.mxu0
        %v1227 = vadd.f32 0.0, %v1226
        %v1228 = vpop.f32.mrf.mxu0
        %v1229 = vadd.f32 0.0, %v1228
        %1230 = vmatmul.bf16.gmra.mxu0 %v924
        %v1231 = vpop.f32.mrf.mxu0
        %v1232 = vadd.f32 0.0, %v1231
        %v1233 = vpop.f32.mrf.mxu0
        %v1234 = vadd.f32 0.0, %v1233
        %1235 = vdwg.mxu0
        %v1236 = vadd.f32 %v1167, %v1202
        %v1237 = vadd.f32 %v1168, %v1204
        %v1238 = vadd.f32 %v1169, %v1207
        %v1239 = vadd.f32 %v1170, %v1209
        %v1240 = vadd.f32 %v1171, %v1212
        %v1241 = vadd.f32 %v1172, %v1214
        %v1242 = vadd.f32 %v1173, %v1217
        %v1243 = vadd.f32 %v1174, %v1219
        %v1244 = vadd.f32 %v1175, %v1222
        %v1245 = vadd.f32 %v1176, %v1224
        %v1246 = vadd.f32 %v1177, %v1227
        %v1247 = vadd.f32 %v1178, %v1229
        %v1248 = vadd.f32 %v1179, %v1232
        %v1249 = vadd.f32 %v1180, %v1234
        %1250 = vst [vmem:[#allocation2] sm:$0xff] %v1236
        %1251 = vst [vmem:[#allocation2 + $0x8] sm:$0xff] %v1237
        %1252 = vst [vmem:[#allocation2 + $0x10] sm:$0xff] %v1238
        %1253 = vst [vmem:[#allocation2 + $0x18] sm:$0xff] %v1239
        %1254 = vst [vmem:[#allocation2 + $0x20] sm:$0xff] %v1240
        %1255 = vst [vmem:[#allocation2 + $0x28] sm:$0xff] %v1241
        %1256 = vst [vmem:[#allocation2 + $0x30] sm:$0xff] %v1242
        %1257 = vst [vmem:[#allocation2 + $0x38] sm:$0xff] %v1243
        %1258 = vst [vmem:[#allocation2 + $0x40] sm:$0xff] %v1244
        %1259 = vst [vmem:[#allocation2 + $0x48] sm:$0xff] %v1245
        %1260 = vst [vmem:[#allocation2 + $0x50] sm:$0xff] %v1246
        %1261 = vst [vmem:[#allocation2 + $0x58] sm:$0xff] %v1247
        %1262 = vst [vmem:[#allocation2 + $0x60] sm:$0xff] %v1248
        %1263 = vst [vmem:[#allocation2 + $0x68] sm:$0xff] %v1249
        %v1264 = vld [vmem:[#allocation2 + $0x70] sm:$0xff]
        %v1265 = vld [vmem:[#allocation2 + $0x78] sm:$0xff]
        %v1266 = vld [vmem:[%s1181] sm:$0xf]
        %v1267 = vld [vmem:[%s1181 + $0x4] sm:$0x3]
        %v1270 = vunpack.c.l.b16 %v848
        %v1271 = vunpack.c.l.b16 %v849
        %v1272 = vpack.c.b16 %v1271, %v1270
        %v1275 = vunpack.c.l.b16 %v1266
        %v1276 = vunpack.c.l.b16 %v1267
        %v1277 = vpack.c.b16 %v1276, %v1275
        %v1279 = vsel %vm901, %v1272, 0
        %v1282 = vsel %vm926, %v1277, 0
        %1284 = vmatpush.bf16.msra.mxu0 0
        %1285 = vmatpush.bf16.msra.mxu0 0
        %1286 = vmatpush.bf16.msra.mxu0 0
        %1287 = vmatpush.bf16.msra.mxu0 0
        %1288 = vmatpush.bf16.msra.mxu0 0
        %1289 = vmatpush.bf16.msra.mxu0 0
        %1290 = vmatpush.bf16.msra.mxu0 0
        %1291 = vmatpush.bf16.msra.mxu0 %v1282
        %1292 = vmatmul.bf16.gmra.mxu0 %v1279
        %v1293 = vpop.f32.mrf.mxu0
        %v1294 = vadd.f32 0.0, %v1293
        %v1295 = vpop.f32.mrf.mxu0
        %v1296 = vadd.f32 0.0, %v1295
        %1297 = vdwg.mxu0
        %v1298 = vadd.f32 %v1264, %v1294
        %v1299 = vadd.f32 %v1265, %v1296
        %1300 = vst [vmem:[#allocation2 + $0x70] sm:$0xff] %v1298
        %1301 = vst [vmem:[#allocation2 + $0x78] sm:$0xff] %v1299
        %v1302 = vld [vmem:[#allocation2] sm:$0xff]
        %v1303 = vld [vmem:[#allocation2 + $0x8] sm:$0xff]
        %v1304 = vld [vmem:[#allocation2 + $0x10] sm:$0xff]
        %v1305 = vld [vmem:[#allocation2 + $0x18] sm:$0xff]
        %v1306 = vld [vmem:[#allocation2 + $0x20] sm:$0xff]
        %v1307 = vld [vmem:[#allocation2 + $0x28] sm:$0xff]
        %v1308 = vld [vmem:[#allocation2 + $0x30] sm:$0xff]
        %v1309 = vld [vmem:[#allocation2 + $0x38] sm:$0xff]
        %v1310 = vld [vmem:[#allocation2 + $0x40] sm:$0xff]
        %v1311 = vld [vmem:[#allocation2 + $0x48] sm:$0xff]
        %v1312 = vld [vmem:[#allocation2 + $0x50] sm:$0xff]
        %v1313 = vld [vmem:[#allocation2 + $0x58] sm:$0xff]
        %v1314 = vld [vmem:[#allocation2 + $0x60] sm:$0xff]
        %v1315 = vld [vmem:[#allocation2 + $0x68] sm:$0xff]
        %v1316 = vld [vmem:[#allocation2 + $0x70] sm:$0xff]
        %v1317 = vld [vmem:[#allocation2 + $0x78] sm:$0xff]
        %1318 = vst [vmem:[%s813] sm:$0xff] %v1302
        %1319 = vst [vmem:[%s813 + $0x8] sm:$0xff] %v1303
        %1320 = vst [vmem:[%s813 + $0x10] sm:$0xff] %v1304
        %1321 = vst [vmem:[%s813 + $0x18] sm:$0xff] %v1305
        %1322 = vst [vmem:[%s813 + $0x20] sm:$0xff] %v1306
        %1323 = vst [vmem:[%s813 + $0x28] sm:$0xff] %v1307
        %1324 = vst [vmem:[%s813 + $0x30] sm:$0xff] %v1308
        %1325 = vst [vmem:[%s813 + $0x38] sm:$0xff] %v1309
        %1326 = vst [vmem:[%s813 + $0x40] sm:$0xff] %v1310
        %1327 = vst [vmem:[%s813 + $0x48] sm:$0xff] %v1311
        %1328 = vst [vmem:[%s813 + $0x50] sm:$0xff] %v1312
        %1329 = vst [vmem:[%s813 + $0x58] sm:$0xff] %v1313
        %1330 = vst [vmem:[%s813 + $0x60] sm:$0xff] %v1314
        %1331 = vst [vmem:[%s813 + $0x68] sm:$0xff] %v1315
        %1332 = vst [vmem:[%s813 + $0x70] sm:$0xff] %v1316
        %1333 = vst [vmem:[%s813 + $0x78] sm:$0xff] %v1317
        %s1334 = smul.u32 16, %s23
        %p1335 = scmp.lt.s32.totalorder %s22, 1
        %s1336 = scalar_select %p1335, %s22, 1
        %p1337 = scmp.lt.s32.totalorder %s1334, 15
        %s1338 = scalar_select %p1337, %s1334, 15
        %p1339 = scmp.lt.s32.totalorder %s21, 0
        %s1340 = scalar_select %p1339, %s21, 0
        %s1341 = sadd.s32 %s1340, %s1338
        %s1342 = smul.addr %s1336, 16
        %s1343 = sadd.s32 %s1341, %s1342
        %s1344 = smul.addr %s1343, 8
        %s1345 = scalar_lea.vmem %s5, %s1344
        // Predicated region
        $region165: #{downsample.1} parent=155 // pred_check
          %p1346 = pneg %p197
        $region166: #{downsample.1} parent=155 // pred_check_branch
          %1348 = sbr.rel (%p1346) target = $region168
        $region167: #{downsample.1} parent=155 // pred_region
          %s1349 = smul.u32 16, %s23
        $region168: #{downsample.1} parent=155 // pred_fallthru
          _
      $region156: #{downsample.1} parent=5 // pred_fallthru
        _
      %p1350 = scmp.le.s32.totalorder 2, %s11
      // Predicated region
      $region169: #{downsample.1} parent=5 // pred_check
        %p1351 = pneg %p1350
      $region170: #{downsample.1} parent=5 // pred_check_branch
        %1353 = sbr.rel (%p1351) target = $region172
      $region171: #{downsample.1} parent=5 // pred_region
        %s1354 = ssub.s32 %s11, 2
        // Predicated region
        $region173: #{downsample.1} parent=171 // pred_check
          %p1355 = pneg %p203
        $region174: #{downsample.1} parent=171 // pred_check_branch
          %1357 = sbr.rel (%p1355) target = $region176
        $region175: #{downsample.1} parent=171 // pred_region
          %s1358 = smul.u32 16, %s26
          %p1359 = scmp.lt.s32.totalorder %s25, 1
          %s1360 = scalar_select %p1359, %s25, 1
          %p1361 = scmp.lt.s32.totalorder %s1358, 15
          %s1362 = scalar_select %p1361, %s1358, 15
          %p1363 = scmp.lt.s32.totalorder %s24, 0
          %s1364 = scalar_select %p1363, %s24, 0
          %s1365 = sadd.s32 %s1364, %s1362
          %s1366 = smul.addr %s1360, 16
          %s1367 = sadd.s32 %s1365, %s1366
          %s1368 = smul.addr %s1367, 8
          %s1369 = scalar_lea.vmem %s5, %s1368
        $region176: #{downsample.1} parent=171 // pred_fallthru
          _
      $region172: #{downsample.1} parent=5 // pred_fallthru
        _
    $region6: #{downsample.1} parent=1 // loop_footer
      %s15 = sadd.s32 1, %s11
    $region7: #{downsample.1} parent=1 // loop_footer_branch
      %10 = sbr.rel target = $region3
    $region8: #{downsample.1} parent=1 // loop_exit
      _

</llo_original>
